<compile_context>
chip_gen: v5e
topology: v5e:2x2
jax: 0.10.0
libtpu: 0.0.40
codegen_flags: <defaults>
</compile_context>

<pallas_src>
import math
import functools

import jax
import jax.numpy as jnp
from jax import lax
from jax.experimental import pallas as pl
from jax.experimental.pallas import tpu as pltpu


def _attn_dropout_kernel(seed_ref, q_ref, k_ref, v_ref, o_ref, *,
                         scale, keep_scale, drop_threshold, seq_len,
                         use_hw_prng, use_approx_recip):
    # Refs arrive squeezed: (S, D)
    q = q_ref[...]
    k = k_ref[...]
    v = v_ref[...]

    # scores = (q @ k^T) * (1 / inv_scale_factor).
    # Contraction over D expressed directly (no explicit k.T), bf16 in / f32 accumulate.
    s = lax.dot_general(
        q.astype(jnp.bfloat16), k.astype(jnp.bfloat16),
        dimension_numbers=(((1,), (1,)), ((), ())),
        preferred_element_type=jnp.float32,
    ) * scale                                             # (S, S) f32

    # numerically-stable (un-normalized) softmax in f32
    m = jnp.max(s, axis=-1, keepdims=True)
    e = jnp.exp(s - m)
    denom = jnp.sum(e, axis=-1, keepdims=True)            # (S, 1)

    # Fold softmax normalization and the dropout 1/(1-p) scale into one per-row factor.
    if use_approx_recip:
        inv = pl.reciprocal(denom, approx=True) * keep_scale
    else:
        inv = keep_scale / denom

    # Dropout mask: keep iff uint32 random bits >= round(p * 2^32).
    if use_hw_prng:
        # TPU hardware PRNG (per-batch stream via program_id as extra seed word).
        pltpu.prng_seed(seed_ref[0], pl.program_id(0))
        bits = pltpu.bitcast(pltpu.prng_random_bits((seq_len, seq_len)), jnp.uint32)
    else:
        # Portable counter-based hash (lowbias32) for interpret / non-TPU backends.
        row = lax.broadcasted_iota(jnp.int32, (seq_len, seq_len), 0)
        col = lax.broadcasted_iota(jnp.int32, (seq_len, seq_len), 1)
        x = (row * seq_len + col).astype(jnp.uint32)
        x = x + (seed_ref[0].astype(jnp.uint32) * jnp.uint32(0x9E3779B9)
                 + (pl.program_id(0).astype(jnp.uint32) + jnp.uint32(1))
                 * jnp.uint32(0x85EBCA6B))
        x = x ^ (x >> jnp.uint32(16))
        x = x * jnp.uint32(0x7FEB352D)
        x = x ^ (x >> jnp.uint32(15))
        x = x * jnp.uint32(0x846CA68B)
        x = x ^ (x >> jnp.uint32(16))
        bits = x
    keep = bits >= jnp.uint32(drop_threshold)

    p_dropped = jnp.where(keep, e * inv, 0.0)              # (S, S) f32

    # output = dropped_probs @ value, bf16 in / f32 accumulate.
    o = jnp.dot(p_dropped.astype(jnp.bfloat16), v.astype(jnp.bfloat16),
                preferred_element_type=jnp.float32)        # (S, D)
    o_ref[...] = o.astype(o_ref.dtype)


def attention_dropout(query, key, value, *, inv_scale_factor, dropout_p, seed=0):
    B, S, D = query.shape
    assert key.shape == (B, S, D) and value.shape == (B, S, D)

    scale = 1.0 / inv_scale_factor          # PyTorch does qk / inv_scale_factor
    keep_scale = 1.0 / (1.0 - dropout_p) if dropout_p < 1.0 else 0.0
    drop_threshold = min(int(round(dropout_p * (2 ** 32))), 2 ** 32 - 1)

    on_tpu = jax.default_backend() == "tpu"

    kernel = functools.partial(
        _attn_dropout_kernel,
        scale=scale, keep_scale=keep_scale, drop_threshold=drop_threshold,
        seq_len=S, use_hw_prng=on_tpu, use_approx_recip=on_tpu,
    )

    seed_arr = jnp.asarray([seed], dtype=jnp.int32)

    return pl.pallas_call(
        kernel,
        out_shape=jax.ShapeDtypeStruct((B, S, D), query.dtype),
        grid_spec=pltpu.PrefetchScalarGridSpec(
            num_scalar_prefetch=1,
            grid=(B,),
            in_specs=[
                pl.BlockSpec((pl.Squeezed(), S, D), lambda b, seed: (b, 0, 0)),
                pl.BlockSpec((pl.Squeezed(), S, D), lambda b, seed: (b, 0, 0)),
                pl.BlockSpec((pl.Squeezed(), S, D), lambda b, seed: (b, 0, 0)),
            ],
            out_specs=pl.BlockSpec((pl.Squeezed(), S, D), lambda b, seed: (b, 0, 0)),
        ),
        compiler_params=pltpu.CompilerParams(
            dimension_semantics=("parallel",),
        ),
    )(seed_arr, query, key, value)
    # TODO(synk): for long sequences, switch to a KV-tiled online-softmax (flash-style)
    # grid so the (S,S) score block never materializes (64 MiB VMEM on v7x).


if __name__ == "__main__":
    # Shapes match the PyTorch script: (1, 128, 512)
    B, S, D = 1, 128, 512
    inv_scale_factor = 1.0 / math.sqrt(D)
    dropout_p = 0.1

    k0 = jax.random.PRNGKey(0)
    kq, kk, kv = jax.random.split(k0, 3)
    query = jax.random.normal(kq, (B, S, D), dtype=jnp.float32)
    key = jax.random.normal(kk, (B, S, D), dtype=jnp.float32)
    value = jax.random.normal(kv, (B, S, D), dtype=jnp.float32)

    out = jax.block_until_ready(attention_dropout(
        query, key, value,
        inv_scale_factor=inv_scale_factor, dropout_p=dropout_p, seed=42))
    assert out.shape == (B, S, D)
    assert bool(jnp.all(jnp.isfinite(out)))

    # Validate the math (matmul/scale/softmax/matmul) with dropout disabled, against a
    # reference that feeds the matmuls in bf16 exactly like the kernel does.
    out_nodrop = jax.block_until_ready(attention_dropout(
        query, key, value,
        inv_scale_factor=inv_scale_factor, dropout_p=0.0, seed=42))
    qb, kb, vb = (t.astype(jnp.bfloat16) for t in (query, key, value))
    s_ref = jnp.einsum("bqd,bkd->bqk", qb, kb,
                       preferred_element_type=jnp.float32) / inv_scale_factor
    p_ref = jax.nn.softmax(s_ref, axis=-1)
    ref = jnp.einsum("bqk,bkd->bqd", p_ref.astype(jnp.bfloat16), vb,
                     preferred_element_type=jnp.float32)
    err = float(jnp.max(jnp.abs(out_nodrop - ref)))
    assert jnp.allclose(out_nodrop, ref, atol=3e-2, rtol=3e-2), err

    print("KERNEL_OK")
</pallas_src>

<mosaic_0001>
module attributes {stable_mosaic.version = 11 : i64} {
  func.func @_attn_dropout_kernel(%arg0: i32, %arg1: memref<1xi32, #tpu.memory_space<smem>>, %arg2: memref<1x128x512xf32, #tpu.memory_space<vmem>>, %arg3: memref<1x128x512xf32, #tpu.memory_space<vmem>>, %arg4: memref<1x128x512xf32, #tpu.memory_space<vmem>>, %arg5: memref<1x128x512xf32, #tpu.memory_space<vmem>>) attributes {dimension_semantics = [#tpu.dimension_semantics<parallel>], iteration_bounds = array<i64: 1>, scalar_prefetch = 1 : i64, scratch_operands = 0 : i64, tpu.core_type = #tpu.core_type<tc>, window_params = [{transform_indices = @transform_0, window_bounds = array<i64: 1, 128, 512>}, {transform_indices = @transform_1, window_bounds = array<i64: 1, 128, 512>}, {transform_indices = @transform_2, window_bounds = array<i64: 1, 128, 512>}, {transform_indices = @transform_3, window_bounds = array<i64: 1, 128, 512>}]} {
    %c0 = arith.constant 0 : index
    %c0_0 = arith.constant 0 : index
    %c0_1 = arith.constant 0 : index
    %0 = vector.load %arg2[%c0, %c0_0, %c0_1] : memref<1x128x512xf32, #tpu.memory_space<vmem>>, vector<1x128x512xf32>
    %1 = vector.shape_cast %0 : vector<1x128x512xf32> to vector<128x512xf32>
    %c0_2 = arith.constant 0 : index
    %c0_3 = arith.constant 0 : index
    %c0_4 = arith.constant 0 : index
    %2 = vector.load %arg3[%c0_2, %c0_3, %c0_4] : memref<1x128x512xf32, #tpu.memory_space<vmem>>, vector<1x128x512xf32>
    %3 = vector.shape_cast %2 : vector<1x128x512xf32> to vector<128x512xf32>
    %c0_5 = arith.constant 0 : index
    %c0_6 = arith.constant 0 : index
    %c0_7 = arith.constant 0 : index
    %4 = vector.load %arg4[%c0_5, %c0_6, %c0_7] : memref<1x128x512xf32, #tpu.memory_space<vmem>>, vector<1x128x512xf32>
    %5 = vector.shape_cast %4 : vector<1x128x512xf32> to vector<128x512xf32>
    %6 = arith.truncf %1 : vector<128x512xf32> to vector<128x512xbf16>
    %7 = arith.truncf %3 : vector<128x512xf32> to vector<128x512xbf16>
    %cst = arith.constant dense<0.000000e+00> : vector<128x128xf32>
    %8 = tpu.matmul %6, %7, %cst {dimension_numbers = #tpu.dot_dimension_numbers<[1], [1], [0], [0], [0, 0, 1, 0], [], []>} : vector<128x512xbf16>, vector<128x512xbf16>, vector<128x128xf32> -> vector<128x128xf32>
    %cst_8 = arith.constant 22.6274166 : f32
    %9 = vector.broadcast %cst_8 : f32 to vector<128x128xf32>
    %10 = arith.mulf %8, %9 : vector<128x128xf32>
    %cst_9 = arith.constant dense<0xFF800000> : vector<128xf32>
    %11 = vector.multi_reduction <maximumf>, %10, %cst_9 [1] : vector<128x128xf32> to vector<128xf32>
    %12 = vector.shape_cast %11 : vector<128xf32> to vector<128x1xf32>
    %13 = vector.broadcast %12 : vector<128x1xf32> to vector<128x128xf32>
    %14 = arith.subf %10, %13 : vector<128x128xf32>
    %15 = math.exp %14 : vector<128x128xf32>
    %cst_10 = arith.constant dense<0.000000e+00> : vector<128xf32>
    %16 = vector.multi_reduction <add>, %15, %cst_10 [1] : vector<128x128xf32> to vector<128xf32>
    %17 = vector.shape_cast %16 : vector<128xf32> to vector<128x1xf32>
    %cst_11 = arith.constant 1.11111116 : f32
    %18 = vector.broadcast %cst_11 : f32 to vector<128x1xf32>
    %19 = arith.divf %18, %17 : vector<128x1xf32>
    %20 = tpu.iota {dimensions = array<i32: 0>} : vector<128x128xi32>
    %21 = tpu.iota {dimensions = array<i32: 1>} : vector<128x128xi32>
    %c128_i32 = arith.constant 128 : i32
    %22 = vector.broadcast %c128_i32 : i32 to vector<128x128xi32>
    %23 = arith.muli %20, %22 : vector<128x128xi32>
    %24 = arith.addi %23, %21 : vector<128x128xi32>
    %c0_12 = arith.constant 0 : index
    %25 = memref.load %arg1[%c0_12] : memref<1xi32, #tpu.memory_space<smem>>
    %c-1640531527_i32 = arith.constant -1640531527 : i32
    %26 = arith.muli %25, %c-1640531527_i32 : i32
    %c1_i32 = arith.constant 1 : i32
    %27 = arith.addi %arg0, %c1_i32 : i32
    %c-2048144789_i32 = arith.constant -2048144789 : i32
    %28 = arith.muli %27, %c-2048144789_i32 : i32
    %29 = arith.addi %26, %28 : i32
    %30 = vector.broadcast %29 : i32 to vector<128x128xi32>
    %31 = arith.addi %24, %30 : vector<128x128xi32>
    %c16_i32 = arith.constant 16 : i32
    %32 = vector.broadcast %c16_i32 : i32 to vector<128x128xi32>
    %33 = arith.shrui %31, %32 : vector<128x128xi32>
    %34 = arith.xori %31, %33 : vector<128x128xi32>
    %c2146121005_i32 = arith.constant 2146121005 : i32
    %35 = vector.broadcast %c2146121005_i32 : i32 to vector<128x128xi32>
    %36 = arith.muli %34, %35 : vector<128x128xi32>
    %c15_i32 = arith.constant 15 : i32
    %37 = vector.broadcast %c15_i32 : i32 to vector<128x128xi32>
    %38 = arith.shrui %36, %37 : vector<128x128xi32>
    %39 = arith.xori %36, %38 : vector<128x128xi32>
    %c-2073254261_i32 = arith.constant -2073254261 : i32
    %40 = vector.broadcast %c-2073254261_i32 : i32 to vector<128x128xi32>
    %41 = arith.muli %39, %40 : vector<128x128xi32>
    %c16_i32_13 = arith.constant 16 : i32
    %42 = vector.broadcast %c16_i32_13 : i32 to vector<128x128xi32>
    %43 = arith.shrui %41, %42 : vector<128x128xi32>
    %44 = arith.xori %41, %43 : vector<128x128xi32>
    %c429496730_i32 = arith.constant 429496730 : i32
    %45 = vector.broadcast %c429496730_i32 : i32 to vector<128x128xi32>
    %46 = arith.cmpi uge, %44, %45 : vector<128x128xi32>
    %47 = vector.broadcast %19 : vector<128x1xf32> to vector<128x128xf32>
    %48 = arith.mulf %15, %47 : vector<128x128xf32>
    %cst_14 = arith.constant 0.000000e+00 : f32
    %49 = vector.broadcast %cst_14 : f32 to vector<128x128xf32>
    %50 = arith.select %46, %48, %49 : vector<128x128xi1>, vector<128x128xf32>
    %51 = arith.truncf %50 : vector<128x128xf32> to vector<128x128xbf16>
    %52 = arith.truncf %5 : vector<128x512xf32> to vector<128x512xbf16>
    %cst_15 = arith.constant dense<0.000000e+00> : vector<128x512xf32>
    %53 = tpu.matmul %51, %52, %cst_15 {dimension_numbers = #tpu.dot_dimension_numbers<[1], [0], [0], [1], [0, 0, 1, 1], [], []>} : vector<128x128xbf16>, vector<128x512xbf16>, vector<128x512xf32> -> vector<128x512xf32>
    %c0_16 = arith.constant 0 : index
    %c0_17 = arith.constant 0 : index
    %c0_18 = arith.constant 0 : index
    %54 = vector.load %arg5[%c0_16, %c0_17, %c0_18] : memref<1x128x512xf32, #tpu.memory_space<vmem>>, vector<1x128x512xf32>
    %55 = vector.shape_cast %54 : vector<1x128x512xf32> to vector<128x512xf32>
    %56 = vector.shape_cast %53 : vector<128x512xf32> to vector<1x128x512xf32>
    tpu.vector_store %arg5[%c0_16, %c0_17, %c0_18], %56 {strides = array<i32>} : memref<1x128x512xf32, #tpu.memory_space<vmem>>, vector<1x128x512xf32>,
    return
  }
  func.func @transform_0(%arg0: i32, %arg1: memref<1xi32, #tpu.memory_space<smem>>) -> (i32, i32, i32) {
    %c0_i32 = arith.constant 0 : i32
    %c0_i32_0 = arith.constant 0 : i32
    %c0_i32_1 = arith.constant 0 : i32
    return %arg0, %c0_i32, %c0_i32_0 : i32, i32, i32
  }
  func.func @transform_1(%arg0: i32, %arg1: memref<1xi32, #tpu.memory_space<smem>>) -> (i32, i32, i32) {
    %c0_i32 = arith.constant 0 : i32
    %c0_i32_0 = arith.constant 0 : i32
    %c0_i32_1 = arith.constant 0 : i32
    return %arg0, %c0_i32, %c0_i32_0 : i32, i32, i32
  }
  func.func @transform_2(%arg0: i32, %arg1: memref<1xi32, #tpu.memory_space<smem>>) -> (i32, i32, i32) {
    %c0_i32 = arith.constant 0 : i32
    %c0_i32_0 = arith.constant 0 : i32
    %c0_i32_1 = arith.constant 0 : i32
    return %arg0, %c0_i32, %c0_i32_0 : i32, i32, i32
  }
  func.func @transform_3(%arg0: i32, %arg1: memref<1xi32, #tpu.memory_space<smem>>) -> (i32, i32, i32) {
    %c0_i32 = arith.constant 0 : i32
    %c0_i32_0 = arith.constant 0 : i32
    %c0_i32_1 = arith.constant 0 : i32
    return %arg0, %c0_i32, %c0_i32_0 : i32, i32, i32
  }
}

</mosaic_0001>

<llo_original>
// kernel: tpu_custom_call.1
$region0: #{tpu_custom_call.1}
  #allocation0 [shape = 'u32[]', space=smem, size = 0x4, offset = 0x4, fixed_abs, tag = 'smem constant byte address 0x4 - core index']
  #allocation1 [shape = 'u32[72,128]{1,0:T(1,128)}', space=vmem, size = 0x9000, scoped, tag = 'internal scratch']
  #allocation2 [shape = 's32[1]{0}', space=sflag, size = 0x4, scoped, tag = 'scoped memory for tpu_custom_call.1']
  #allocation3 [shape = 's32[1]{0:T(128)S(6)}', space=smem, size = 0x200, scoped, tag = 'prefetched SMEM operand 0']
  %s0 = inlined_call_operand.<no memory space> [shape: s32[1], index: 0, kind: input, shape index: {}]
  %s1 = inlined_call_operand.hbm [shape: f32[1,128,512], index: 1, kind: input, shape index: {}]
  %s2 = inlined_call_operand.hbm [shape: f32[1,128,512], index: 2, kind: input, shape index: {}]
  %s3 = inlined_call_operand.hbm [shape: f32[1,128,512], index: 3, kind: input, shape index: {}]
  %s4 = inlined_call_operand.hbm [shape: f32[1,128,512], index: 4, kind: output, shape index: {}]
  %s5 = sld [smem:[#allocation0]]
  $region34: #{tpu_custom_call.1} parent=0
    _
  %s7 = ssub.s32 1, %s5
  %s8 = scalar_select 0, %s7, %s5
  %9 = sst [smem:[#allocation3]] %s0
  $region1: #{tpu_custom_call.1} parent=0
    #allocation4 [shape = 'u8[262144]{0}', space=vmem, size = 0x40000, scoped, tag = 'input window, operand 1, single buffered']
    #allocation5 [shape = 's32[1]{0}', space=sflag, size = 0x4, scoped, tag = 'scoped memory for tpu_custom_call.1']
    #allocation6 [shape = 's32[1]{0}', space=sflag, size = 0x4, scoped, tag = 'scoped memory for tpu_custom_call.1']
    #allocation7 [shape = 'u8[262144]{0}', space=vmem, size = 0x40000, scoped, tag = 'input window, operand 2, single buffered']
    #allocation8 [shape = 's32[1]{0}', space=sflag, size = 0x4, scoped, tag = 'scoped memory for tpu_custom_call.1']
    #allocation9 [shape = 'u8[262144]{0}', space=vmem, size = 0x40000, scoped, tag = 'input window, operand 3, single buffered']
    #allocation10 [shape = 'u8[262144]{0}', space=vmem, size = 0x40000, scoped, tag = 'output window, operand 0, single buffered']
    %10 = vsyncpa [#allocation5], 0
    %11 = vsyncpa [#allocation8], 0
    %12 = vsyncpa [#allocation6], 0
    // Predicated region
    $region2: #{tpu_custom_call.1} parent=1 // pred_check
      _
    $region3: #{tpu_custom_call.1} parent=1 // pred_check_branch
      %14 = sbr.rel (0) target = $region5
    $region4: #{tpu_custom_call.1} parent=1 // pred_region
      %16 = vsyncadd [#allocation5], 0
      %s17 = sshll.u32 %s1, 4
      %s18 = int_to_ptr.hbm [resolvable:$true] %s17
      %s19 = sshll.u32 [#allocation4], 4
      %s20 = int_to_ptr.vmem [resolvable:$true] %s19
      %25 = dma.hbm_to_vmem [thread:$0]  %s18, 8192, %s20, [#allocation5], 512, 512, 32
    $region5: #{tpu_custom_call.1} parent=1 // pred_fallthru
      _
    // Predicated region
    $region6: #{tpu_custom_call.1} parent=1 // pred_check
      _
    $region7: #{tpu_custom_call.1} parent=1 // pred_check_branch
      %27 = sbr.rel (0) target = $region9
    $region8: #{tpu_custom_call.1} parent=1 // pred_region
      %29 = vsyncadd [#allocation8], 0
      %s30 = sshll.u32 %s2, 4
      %s31 = int_to_ptr.hbm [resolvable:$true] %s30
      %s32 = sshll.u32 [#allocation7], 4
      %s33 = int_to_ptr.vmem [resolvable:$true] %s32
      %38 = dma.hbm_to_vmem [thread:$0]  %s31, 8192, %s33, [#allocation8], 512, 512, 32
    $region9: #{tpu_custom_call.1} parent=1 // pred_fallthru
      _
    // Predicated region
    $region10: #{tpu_custom_call.1} parent=1 // pred_check
      _
    $region11: #{tpu_custom_call.1} parent=1 // pred_check_branch
      %40 = sbr.rel (0) target = $region13
    $region12: #{tpu_custom_call.1} parent=1 // pred_region
      %42 = vsyncadd [#allocation8], 0
      %s43 = sshll.u32 %s3, 4
      %s44 = int_to_ptr.hbm [resolvable:$true] %s43
      %s45 = sshll.u32 [#allocation9], 4
      %s46 = int_to_ptr.vmem [resolvable:$true] %s45
      %51 = dma.hbm_to_vmem [thread:$0]  %s44, 8192, %s46, [#allocation8], 512, 512, 32
    $region13: #{tpu_custom_call.1} parent=1 // pred_fallthru
      _
    // Predicated region
    $region14: #{tpu_custom_call.1} parent=1 // pred_check
      _
    $region15: #{tpu_custom_call.1} parent=1 // pred_check_branch
      %53 = sbr.rel (0) target = $region17
    $region16: #{tpu_custom_call.1} parent=1 // pred_region
      %55 = dma.done [#allocation5], 8192
    $region17: #{tpu_custom_call.1} parent=1 // pred_fallthru
      _
    // Predicated region
    $region18: #{tpu_custom_call.1} parent=1 // pred_check
      _
    $region19: #{tpu_custom_call.1} parent=1 // pred_check_branch
      %57 = sbr.rel (0) target = $region21
    $region20: #{tpu_custom_call.1} parent=1 // pred_region
      %59 = dma.done [#allocation8], 8192
    $region21: #{tpu_custom_call.1} parent=1 // pred_fallthru
      _
    // Predicated region
    $region22: #{tpu_custom_call.1} parent=1 // pred_check
      _
    $region23: #{tpu_custom_call.1} parent=1 // pred_check_branch
      %61 = sbr.rel (0) target = $region25
    $region24: #{tpu_custom_call.1} parent=1 // pred_region
      %63 = dma.done [#allocation8], 8192
    $region25: #{tpu_custom_call.1} parent=1 // pred_fallthru
      _
    %v64 = vld [vmem:[#allocation4] sm:$0xff]
    %v65 = vld [vmem:[#allocation4 + $0x8] sm:$0xff]
    %v66 = vld [vmem:[#allocation4 + $0x10] sm:$0xff]
    %v67 = vld [vmem:[#allocation4 + $0x18] sm:$0xff]
    %v68 = vld [vmem:[#allocation4 + $0x20] sm:$0xff]
    %v69 = vld [vmem:[#allocation4 + $0x28] sm:$0xff]
    %v70 = vld [vmem:[#allocation4 + $0x30] sm:$0xff]
    %v71 = vld [vmem:[#allocation4 + $0x38] sm:$0xff]
    %v72 = vld [vmem:[#allocation4 + $0x40] sm:$0xff]
    %v73 = vld [vmem:[#allocation4 + $0x48] sm:$0xff]
    %v74 = vld [vmem:[#allocation4 + $0x50] sm:$0xff]
    %v75 = vld [vmem:[#allocation4 + $0x58] sm:$0xff]
    %v76 = vld [vmem:[#allocation4 + $0x60] sm:$0xff]
    %v77 = vld [vmem:[#allocation4 + $0x68] sm:$0xff]
    %v78 = vld [vmem:[#allocation4 + $0x70] sm:$0xff]
    %v79 = vld [vmem:[#allocation4 + $0x78] sm:$0xff]
    %v80 = vld [vmem:[#allocation4 + $0x80] sm:$0xff]
    %v81 = vld [vmem:[#allocation4 + $0x88] sm:$0xff]
    %v82 = vld [vmem:[#allocation4 + $0x90] sm:$0xff]
    %v83 = vld [vmem:[#allocation4 + $0x98] sm:$0xff]
    %v84 = vld [vmem:[#allocation4 + $0xa0] sm:$0xff]
    %v85 = vld [vmem:[#allocation4 + $0xa8] sm:$0xff]
    %v86 = vld [vmem:[#allocation4 + $0xb0] sm:$0xff]
    %v87 = vld [vmem:[#allocation4 + $0xb8] sm:$0xff]
    %v88 = vld [vmem:[#allocation4 + $0xc0] sm:$0xff]
    %v89 = vld [vmem:[#allocation4 + $0xc8] sm:$0xff]
    %v90 = vld [vmem:[#allocation4 + $0xd0] sm:$0xff]
    %v91 = vld [vmem:[#allocation4 + $0xd8] sm:$0xff]
    %v92 = vld [vmem:[#allocation4 + $0xe0] sm:$0xff]
    %v93 = vld [vmem:[#allocation4 + $0xe8] sm:$0xff]
    %v94 = vld [vmem:[#allocation4 + $0xf0] sm:$0xff]
    %v95 = vld [vmem:[#allocation4 + $0xf8] sm:$0xff]
    %v96 = vld [vmem:[#allocation4 + $0x100] sm:$0xff]
    %v97 = vld [vmem:[#allocation4 + $0x108] sm:$0xff]
    %v98 = vld [vmem:[#allocation4 + $0x110] sm:$0xff]
    %v99 = vld [vmem:[#allocation4 + $0x118] sm:$0xff]
    %v100 = vld [vmem:[#allocation4 + $0x120] sm:$0xff]
    %v101 = vld [vmem:[#allocation4 + $0x128] sm:$0xff]
    %v102 = vld [vmem:[#allocation4 + $0x130] sm:$0xff]
    %v103 = vld [vmem:[#allocation4 + $0x138] sm:$0xff]
    %v104 = vld [vmem:[#allocation4 + $0x140] sm:$0xff]
    %v105 = vld [vmem:[#allocation4 + $0x148] sm:$0xff]
    %v106 = vld [vmem:[#allocation4 + $0x150] sm:$0xff]
    %v107 = vld [vmem:[#allocation4 + $0x158] sm:$0xff]
    %v108 = vld [vmem:[#allocation4 + $0x160] sm:$0xff]
    %v109 = vld [vmem:[#allocation4 + $0x168] sm:$0xff]
    %v110 = vld [vmem:[#allocation4 + $0x170] sm:$0xff]
    %v111 = vld [vmem:[#allocation4 + $0x178] sm:$0xff]
    %v112 = vld [vmem:[#allocation4 + $0x180] sm:$0xff]
    %v113 = vld [vmem:[#allocation4 + $0x188] sm:$0xff]
    %v114 = vld [vmem:[#allocation4 + $0x190] sm:$0xff]
    %v115 = vld [vmem:[#allocation4 + $0x198] sm:$0xff]
    %v116 = vld [vmem:[#allocation4 + $0x1a0] sm:$0xff]
    %v117 = vld [vmem:[#allocation4 + $0x1a8] sm:$0xff]
    %v118 = vld [vmem:[#allocation4 + $0x1b0] sm:$0xff]
    %v119 = vld [vmem:[#allocation4 + $0x1b8] sm:$0xff]
    %v120 = vld [vmem:[#allocation4 + $0x1c0] sm:$0xff]
    %v121 = vld [vmem:[#allocation4 + $0x1c8] sm:$0xff]
    %v122 = vld [vmem:[#allocation4 + $0x1d0] sm:$0xff]
    %v123 = vld [vmem:[#allocation4 + $0x1d8] sm:$0xff]
    %v124 = vld [vmem:[#allocation4 + $0x1e0] sm:$0xff]
    %v125 = vld [vmem:[#allocation4 + $0x1e8] sm:$0xff]
    %v126 = vld [vmem:[#allocation4 + $0x1f0] sm:$0xff]
    %v127 = vld [vmem:[#allocation4 + $0x1f8] sm:$0xff]
    %v128 = vld [vmem:[#allocation7] sm:$0xff]
    %v129 = vld [vmem:[#allocation7 + $0x8] sm:$0xff]
    %v130 = vld [vmem:[#allocation7 + $0x10] sm:$0xff]
    %v131 = vld [vmem:[#allocation7 + $0x18] sm:$0xff]
    %v132 = vld [vmem:[#allocation7 + $0x20] sm:$0xff]
    %v133 = vld [vmem:[#allocation7 + $0x28] sm:$0xff]
    %v134 = vld [vmem:[#allocation7 + $0x30] sm:$0xff]
    %v135 = vld [vmem:[#allocation7 + $0x38] sm:$0xff]
    %v136 = vld [vmem:[#allocation7 + $0x40] sm:$0xff]
    %v137 = vld [vmem:[#allocation7 + $0x48] sm:$0xff]
    %v138 = vld [vmem:[#allocation7 + $0x50] sm:$0xff]
    %v139 = vld [vmem:[#allocation7 + $0x58] sm:$0xff]
    %v140 = vld [vmem:[#allocation7 + $0x60] sm:$0xff]
    %v141 = vld [vmem:[#allocation7 + $0x68] sm:$0xff]
    %v142 = vld [vmem:[#allocation7 + $0x70] sm:$0xff]
    %v143 = vld [vmem:[#allocation7 + $0x78] sm:$0xff]
    %v144 = vld [vmem:[#allocation7 + $0x80] sm:$0xff]
    %v145 = vld [vmem:[#allocation7 + $0x88] sm:$0xff]
    %v146 = vld [vmem:[#allocation7 + $0x90] sm:$0xff]
    %v147 = vld [vmem:[#allocation7 + $0x98] sm:$0xff]
    %v148 = vld [vmem:[#allocation7 + $0xa0] sm:$0xff]
    %v149 = vld [vmem:[#allocation7 + $0xa8] sm:$0xff]
    %v150 = vld [vmem:[#allocation7 + $0xb0] sm:$0xff]
    %v151 = vld [vmem:[#allocation7 + $0xb8] sm:$0xff]
    %v152 = vld [vmem:[#allocation7 + $0xc0] sm:$0xff]
    %v153 = vld [vmem:[#allocation7 + $0xc8] sm:$0xff]
    %v154 = vld [vmem:[#allocation7 + $0xd0] sm:$0xff]
    %v155 = vld [vmem:[#allocation7 + $0xd8] sm:$0xff]
    %v156 = vld [vmem:[#allocation7 + $0xe0] sm:$0xff]
    %v157 = vld [vmem:[#allocation7 + $0xe8] sm:$0xff]
    %v158 = vld [vmem:[#allocation7 + $0xf0] sm:$0xff]
    %v159 = vld [vmem:[#allocation7 + $0xf8] sm:$0xff]
    %v160 = vld [vmem:[#allocation7 + $0x100] sm:$0xff]
    %v161 = vld [vmem:[#allocation7 + $0x108] sm:$0xff]
    %v162 = vld [vmem:[#allocation7 + $0x110] sm:$0xff]
    %v163 = vld [vmem:[#allocation7 + $0x118] sm:$0xff]
    %v164 = vld [vmem:[#allocation7 + $0x120] sm:$0xff]
    %v165 = vld [vmem:[#allocation7 + $0x128] sm:$0xff]
    %v166 = vld [vmem:[#allocation7 + $0x130] sm:$0xff]
    %v167 = vld [vmem:[#allocation7 + $0x138] sm:$0xff]
    %v168 = vld [vmem:[#allocation7 + $0x140] sm:$0xff]
    %v169 = vld [vmem:[#allocation7 + $0x148] sm:$0xff]
    %v170 = vld [vmem:[#allocation7 + $0x150] sm:$0xff]
    %v171 = vld [vmem:[#allocation7 + $0x158] sm:$0xff]
    %v172 = vld [vmem:[#allocation7 + $0x160] sm:$0xff]
    %v173 = vld [vmem:[#allocation7 + $0x168] sm:$0xff]
    %v174 = vld [vmem:[#allocation7 + $0x170] sm:$0xff]
    %v175 = vld [vmem:[#allocation7 + $0x178] sm:$0xff]
    %v176 = vld [vmem:[#allocation7 + $0x180] sm:$0xff]
    %v177 = vld [vmem:[#allocation7 + $0x188] sm:$0xff]
    %v178 = vld [vmem:[#allocation7 + $0x190] sm:$0xff]
    %v179 = vld [vmem:[#allocation7 + $0x198] sm:$0xff]
    %v180 = vld [vmem:[#allocation7 + $0x1a0] sm:$0xff]
    %v181 = vld [vmem:[#allocation7 + $0x1a8] sm:$0xff]
    %v182 = vld [vmem:[#allocation7 + $0x1b0] sm:$0xff]
    %v183 = vld [vmem:[#allocation7 + $0x1b8] sm:$0xff]
    %v184 = vld [vmem:[#allocation7 + $0x1c0] sm:$0xff]
    %v185 = vld [vmem:[#allocation7 + $0x1c8] sm:$0xff]
    %v186 = vld [vmem:[#allocation7 + $0x1d0] sm:$0xff]
    %v187 = vld [vmem:[#allocation7 + $0x1d8] sm:$0xff]
    %v188 = vld [vmem:[#allocation7 + $0x1e0] sm:$0xff]
    %v189 = vld [vmem:[#allocation7 + $0x1e8] sm:$0xff]
    %v190 = vld [vmem:[#allocation7 + $0x1f0] sm:$0xff]
    %v191 = vld [vmem:[#allocation7 + $0x1f8] sm:$0xff]
    %v192 = vld [vmem:[#allocation9] sm:$0xff]
    %v193 = vld [vmem:[#allocation9 + $0x8] sm:$0xff]
    %v194 = vld [vmem:[#allocation9 + $0x10] sm:$0xff]
    %v195 = vld [vmem:[#allocation9 + $0x18] sm:$0xff]
    %v196 = vld [vmem:[#allocation9 + $0x20] sm:$0xff]
    %v197 = vld [vmem:[#allocation9 + $0x28] sm:$0xff]
    %v198 = vld [vmem:[#allocation9 + $0x30] sm:$0xff]
    %v199 = vld [vmem:[#allocation9 + $0x38] sm:$0xff]
    %v200 = vld [vmem:[#allocation9 + $0x40] sm:$0xff]
    %v201 = vld [vmem:[#allocation9 + $0x48] sm:$0xff]
    %v202 = vld [vmem:[#allocation9 + $0x50] sm:$0xff]
    %v203 = vld [vmem:[#allocation9 + $0x58] sm:$0xff]
    %v204 = vld [vmem:[#allocation9 + $0x60] sm:$0xff]
    %v205 = vld [vmem:[#allocation9 + $0x68] sm:$0xff]
    %v206 = vld [vmem:[#allocation9 + $0x70] sm:$0xff]
    %v207 = vld [vmem:[#allocation9 + $0x78] sm:$0xff]
    %v208 = vld [vmem:[#allocation9 + $0x80] sm:$0xff]
    %v209 = vld [vmem:[#allocation9 + $0x88] sm:$0xff]
    %v210 = vld [vmem:[#allocation9 + $0x90] sm:$0xff]
    %v211 = vld [vmem:[#allocation9 + $0x98] sm:$0xff]
    %v212 = vld [vmem:[#allocation9 + $0xa0] sm:$0xff]
    %v213 = vld [vmem:[#allocation9 + $0xa8] sm:$0xff]
    %v214 = vld [vmem:[#allocation9 + $0xb0] sm:$0xff]
    %v215 = vld [vmem:[#allocation9 + $0xb8] sm:$0xff]
    %v216 = vld [vmem:[#allocation9 + $0xc0] sm:$0xff]
    %v217 = vld [vmem:[#allocation9 + $0xc8] sm:$0xff]
    %v218 = vld [vmem:[#allocation9 + $0xd0] sm:$0xff]
    %v219 = vld [vmem:[#allocation9 + $0xd8] sm:$0xff]
    %v220 = vld [vmem:[#allocation9 + $0xe0] sm:$0xff]
    %v221 = vld [vmem:[#allocation9 + $0xe8] sm:$0xff]
    %v222 = vld [vmem:[#allocation9 + $0xf0] sm:$0xff]
    %v223 = vld [vmem:[#allocation9 + $0xf8] sm:$0xff]
    %v224 = vld [vmem:[#allocation9 + $0x100] sm:$0xff]
    %v225 = vld [vmem:[#allocation9 + $0x108] sm:$0xff]
    %v226 = vld [vmem:[#allocation9 + $0x110] sm:$0xff]
    %v227 = vld [vmem:[#allocation9 + $0x118] sm:$0xff]
    %v228 = vld [vmem:[#allocation9 + $0x120] sm:$0xff]
    %v229 = vld [vmem:[#allocation9 + $0x128] sm:$0xff]
    %v230 = vld [vmem:[#allocation9 + $0x130] sm:$0xff]
    %v231 = vld [vmem:[#allocation9 + $0x138] sm:$0xff]
    %v232 = vld [vmem:[#allocation9 + $0x140] sm:$0xff]
    %v233 = vld [vmem:[#allocation9 + $0x148] sm:$0xff]
    %v234 = vld [vmem:[#allocation9 + $0x150] sm:$0xff]
    %v235 = vld [vmem:[#allocation9 + $0x158] sm:$0xff]
    %v236 = vld [vmem:[#allocation9 + $0x160] sm:$0xff]
    %v237 = vld [vmem:[#allocation9 + $0x168] sm:$0xff]
    %v238 = vld [vmem:[#allocation9 + $0x170] sm:$0xff]
    %v239 = vld [vmem:[#allocation9 + $0x178] sm:$0xff]
    %v240 = vld [vmem:[#allocation9 + $0x180] sm:$0xff]
    %v241 = vld [vmem:[#allocation9 + $0x188] sm:$0xff]
    %v242 = vld [vmem:[#allocation9 + $0x190] sm:$0xff]
    %v243 = vld [vmem:[#allocation9 + $0x198] sm:$0xff]
    %v244 = vld [vmem:[#allocation9 + $0x1a0] sm:$0xff]
    %v245 = vld [vmem:[#allocation9 + $0x1a8] sm:$0xff]
    %v246 = vld [vmem:[#allocation9 + $0x1b0] sm:$0xff]
    %v247 = vld [vmem:[#allocation9 + $0x1b8] sm:$0xff]
    %v248 = vld [vmem:[#allocation9 + $0x1c0] sm:$0xff]
    %v249 = vld [vmem:[#allocation9 + $0x1c8] sm:$0xff]
    %v250 = vld [vmem:[#allocation9 + $0x1d0] sm:$0xff]
    %v251 = vld [vmem:[#allocation9 + $0x1d8] sm:$0xff]
    %v252 = vld [vmem:[#allocation9 + $0x1e0] sm:$0xff]
    %v253 = vld [vmem:[#allocation9 + $0x1e8] sm:$0xff]
    %v254 = vld [vmem:[#allocation9 + $0x1f0] sm:$0xff]
    %v255 = vld [vmem:[#allocation9 + $0x1f8] sm:$0xff]
    %v256 = vpack.c.bf16 %v68, %v64
    %v257 = vpack.c.bf16 %v69, %v65
    %v258 = vpack.c.bf16 %v70, %v66
    %v259 = vpack.c.bf16 %v71, %v67
    %v260 = vpack.c.bf16 %v76, %v72
    %v261 = vpack.c.bf16 %v77, %v73
    %v262 = vpack.c.bf16 %v78, %v74
    %v263 = vpack.c.bf16 %v79, %v75
    %v264 = vpack.c.bf16 %v84, %v80
    %v265 = vpack.c.bf16 %v85, %v81
    %v266 = vpack.c.bf16 %v86, %v82
    %v267 = vpack.c.bf16 %v87, %v83
    %v268 = vpack.c.bf16 %v92, %v88
    %v269 = vpack.c.bf16 %v93, %v89
    %v270 = vpack.c.bf16 %v94, %v90
    %v271 = vpack.c.bf16 %v95, %v91
    %v272 = vpack.c.bf16 %v100, %v96
    %v273 = vpack.c.bf16 %v101, %v97
    %v274 = vpack.c.bf16 %v102, %v98
    %v275 = vpack.c.bf16 %v103, %v99
    %v276 = vpack.c.bf16 %v108, %v104
    %v277 = vpack.c.bf16 %v109, %v105
    %v278 = vpack.c.bf16 %v110, %v106
    %v279 = vpack.c.bf16 %v111, %v107
    %v280 = vpack.c.bf16 %v116, %v112
    %v281 = vpack.c.bf16 %v117, %v113
    %v282 = vpack.c.bf16 %v118, %v114
    %v283 = vpack.c.bf16 %v119, %v115
    %v284 = vpack.c.bf16 %v124, %v120
    %v285 = vpack.c.bf16 %v125, %v121
    %v286 = vpack.c.bf16 %v126, %v122
    %v287 = vpack.c.bf16 %v127, %v123
    %v288 = vpack.c.bf16 %v132, %v128
    %v289 = vpack.c.bf16 %v133, %v129
    %v290 = vpack.c.bf16 %v134, %v130
    %v291 = vpack.c.bf16 %v135, %v131
    %v292 = vpack.c.bf16 %v140, %v136
    %v293 = vpack.c.bf16 %v141, %v137
    %v294 = vpack.c.bf16 %v142, %v138
    %v295 = vpack.c.bf16 %v143, %v139
    %v296 = vpack.c.bf16 %v148, %v144
    %v297 = vpack.c.bf16 %v149, %v145
    %v298 = vpack.c.bf16 %v150, %v146
    %v299 = vpack.c.bf16 %v151, %v147
    %v300 = vpack.c.bf16 %v156, %v152
    %v301 = vpack.c.bf16 %v157, %v153
    %v302 = vpack.c.bf16 %v158, %v154
    %v303 = vpack.c.bf16 %v159, %v155
    %v304 = vpack.c.bf16 %v164, %v160
    %v305 = vpack.c.bf16 %v165, %v161
    %v306 = vpack.c.bf16 %v166, %v162
    %v307 = vpack.c.bf16 %v167, %v163
    %v308 = vpack.c.bf16 %v172, %v168
    %v309 = vpack.c.bf16 %v173, %v169
    %v310 = vpack.c.bf16 %v174, %v170
    %v311 = vpack.c.bf16 %v175, %v171
    %v312 = vpack.c.bf16 %v180, %v176
    %v313 = vpack.c.bf16 %v181, %v177
    %v314 = vpack.c.bf16 %v182, %v178
    %v315 = vpack.c.bf16 %v183, %v179
    %v316 = vpack.c.bf16 %v188, %v184
    %v317 = vpack.c.bf16 %v189, %v185
    %v318 = vpack.c.bf16 %v190, %v186
    %v319 = vpack.c.bf16 %v191, %v187
    %320 = vmatpush.bf16.xpose.msra.mxu0 %v316
    %321 = vmatpush.bf16.xpose.msra.mxu0 %v312
    %322 = vmatpush.bf16.xpose.msra.mxu0 %v308
    %323 = vmatpush.bf16.xpose.msra.mxu0 %v304
    %324 = vmatpush.bf16.xpose.msra.mxu0 %v300
    %325 = vmatpush.bf16.xpose.msra.mxu0 %v296
    %326 = vmatpush.bf16.xpose.msra.mxu0 %v292
    %327 = vmatpush.bf16.xpose.msra.mxu0 %v288
    %328 = vmatmul.bf16.gmra.mxu0 %v256
    %v329 = vpop.f32.mrf.mxu0
    %v330 = vadd.f32 0.0, %v329
    %v331 = vpop.f32.mrf.mxu0
    %v332 = vadd.f32 0.0, %v331
    %333 = vmatmul.bf16.gmra.mxu0 %v260
    %v334 = vpop.f32.mrf.mxu0
    %v335 = vadd.f32 0.0, %v334
    %v336 = vpop.f32.mrf.mxu0
    %v337 = vadd.f32 0.0, %v336
    %338 = vmatmul.bf16.gmra.mxu0 %v264
    %v339 = vpop.f32.mrf.mxu0
    %v340 = vadd.f32 0.0, %v339
    %v341 = vpop.f32.mrf.mxu0
    %v342 = vadd.f32 0.0, %v341
    %343 = vmatmul.bf16.gmra.mxu0 %v268
    %v344 = vpop.f32.mrf.mxu0
    %v345 = vadd.f32 0.0, %v344
    %v346 = vpop.f32.mrf.mxu0
    %v347 = vadd.f32 0.0, %v346
    %348 = vmatmul.bf16.gmra.mxu0 %v272
    %v349 = vpop.f32.mrf.mxu0
    %v350 = vadd.f32 0.0, %v349
    %v351 = vpop.f32.mrf.mxu0
    %v352 = vadd.f32 0.0, %v351
    %353 = vmatmul.bf16.gmra.mxu0 %v276
    %v354 = vpop.f32.mrf.mxu0
    %v355 = vadd.f32 0.0, %v354
    %v356 = vpop.f32.mrf.mxu0
    %v357 = vadd.f32 0.0, %v356
    %358 = vmatmul.bf16.gmra.mxu0 %v280
    %v359 = vpop.f32.mrf.mxu0
    %v360 = vadd.f32 0.0, %v359
    %v361 = vpop.f32.mrf.mxu0
    %v362 = vadd.f32 0.0, %v361
    %363 = vmatmul.bf16.gmra.mxu0 %v284
    %v364 = vpop.f32.mrf.mxu0
    %v365 = vadd.f32 0.0, %v364
    %v366 = vpop.f32.mrf.mxu0
    %v367 = vadd.f32 0.0, %v366
    %368 = vdwg.mxu0
    %369 = vmatpush.bf16.xpose.msra.mxu0 %v317
    %370 = vmatpush.bf16.xpose.msra.mxu0 %v313
    %371 = vmatpush.bf16.xpose.msra.mxu0 %v309
    %372 = vmatpush.bf16.xpose.msra.mxu0 %v305
    %373 = vmatpush.bf16.xpose.msra.mxu0 %v301
    %374 = vmatpush.bf16.xpose.msra.mxu0 %v297
    %375 = vmatpush.bf16.xpose.msra.mxu0 %v293
    %376 = vmatpush.bf16.xpose.msra.mxu0 %v289
    %377 = vmatmul.bf16.gmra.mxu0 %v257
    %v378 = vpop.f32.mrf.mxu0
    %v379 = vadd.f32 %v330, %v378
    %v380 = vpop.f32.mrf.mxu0
    %v381 = vadd.f32 %v332, %v380
    %382 = vmatmul.bf16.gmra.mxu0 %v261
    %v383 = vpop.f32.mrf.mxu0
    %v384 = vadd.f32 %v335, %v383
    %v385 = vpop.f32.mrf.mxu0
    %v386 = vadd.f32 %v337, %v385
    %387 = vmatmul.bf16.gmra.mxu0 %v265
    %v388 = vpop.f32.mrf.mxu0
    %v389 = vadd.f32 %v340, %v388
    %v390 = vpop.f32.mrf.mxu0
    %v391 = vadd.f32 %v342, %v390
    %392 = vmatmul.bf16.gmra.mxu0 %v269
    %v393 = vpop.f32.mrf.mxu0
    %v394 = vadd.f32 %v345, %v393
    %v395 = vpop.f32.mrf.mxu0
    %v396 = vadd.f32 %v347, %v395
    %397 = vmatmul.bf16.gmra.mxu0 %v273
    %v398 = vpop.f32.mrf.mxu0
    %v399 = vadd.f32 %v350, %v398
    %v400 = vpop.f32.mrf.mxu0
    %v401 = vadd.f32 %v352, %v400
    %402 = vmatmul.bf16.gmra.mxu0 %v277
    %v403 = vpop.f32.mrf.mxu0
    %v404 = vadd.f32 %v355, %v403
    %v405 = vpop.f32.mrf.mxu0
    %v406 = vadd.f32 %v357, %v405
    %407 = vmatmul.bf16.gmra.mxu0 %v281
    %v408 = vpop.f32.mrf.mxu0
    %v409 = vadd.f32 %v360, %v408
    %v410 = vpop.f32.mrf.mxu0
    %v411 = vadd.f32 %v362, %v410
    %412 = vmatmul.bf16.gmra.mxu0 %v285
    %v413 = vpop.f32.mrf.mxu0
    %v414 = vadd.f32 %v365, %v413
    %v415 = vpop.f32.mrf.mxu0
    %v416 = vadd.f32 %v367, %v415
    %417 = vdwg.mxu0
    %418 = vmatpush.bf16.xpose.msra.mxu0 %v318
    %419 = vmatpush.bf16.xpose.msra.mxu0 %v314
    %420 = vmatpush.bf16.xpose.msra.mxu0 %v310
    %421 = vmatpush.bf16.xpose.msra.mxu0 %v306
    %422 = vmatpush.bf16.xpose.msra.mxu0 %v302
    %423 = vmatpush.bf16.xpose.msra.mxu0 %v298
    %424 = vmatpush.bf16.xpose.msra.mxu0 %v294
    %425 = vmatpush.bf16.xpose.msra.mxu0 %v290
    %426 = vmatmul.bf16.gmra.mxu0 %v258
    %v427 = vpop.f32.mrf.mxu0
    %v428 = vadd.f32 %v379, %v427
    %v429 = vpop.f32.mrf.mxu0
    %v430 = vadd.f32 %v381, %v429
    %431 = vmatmul.bf16.gmra.mxu0 %v262
    %v432 = vpop.f32.mrf.mxu0
    %v433 = vadd.f32 %v384, %v432
    %v434 = vpop.f32.mrf.mxu0
    %v435 = vadd.f32 %v386, %v434
    %436 = vmatmul.bf16.gmra.mxu0 %v266
    %v437 = vpop.f32.mrf.mxu0
    %v438 = vadd.f32 %v389, %v437
    %v439 = vpop.f32.mrf.mxu0
    %v440 = vadd.f32 %v391, %v439
    %441 = vmatmul.bf16.gmra.mxu0 %v270
    %v442 = vpop.f32.mrf.mxu0
    %v443 = vadd.f32 %v394, %v442
    %v444 = vpop.f32.mrf.mxu0
    %v445 = vadd.f32 %v396, %v444
    %446 = vmatmul.bf16.gmra.mxu0 %v274
    %v447 = vpop.f32.mrf.mxu0
    %v448 = vadd.f32 %v399, %v447
    %v449 = vpop.f32.mrf.mxu0
    %v450 = vadd.f32 %v401, %v449
    %451 = vmatmul.bf16.gmra.mxu0 %v278
    %v452 = vpop.f32.mrf.mxu0
    %v453 = vadd.f32 %v404, %v452
    %v454 = vpop.f32.mrf.mxu0
    %v455 = vadd.f32 %v406, %v454
    %456 = vmatmul.bf16.gmra.mxu0 %v282
    %v457 = vpop.f32.mrf.mxu0
    %v458 = vadd.f32 %v409, %v457
    %v459 = vpop.f32.mrf.mxu0
    %v460 = vadd.f32 %v411, %v459
    %461 = vmatmul.bf16.gmra.mxu0 %v286
    %v462 = vpop.f32.mrf.mxu0
    %v463 = vadd.f32 %v414, %v462
    %v464 = vpop.f32.mrf.mxu0
    %v465 = vadd.f32 %v416, %v464
    %466 = vdwg.mxu0
    %467 = vmatpush.bf16.xpose.msra.mxu0 %v319
    %468 = vmatpush.bf16.xpose.msra.mxu0 %v315
    %469 = vmatpush.bf16.xpose.msra.mxu0 %v311
    %470 = vmatpush.bf16.xpose.msra.mxu0 %v307
    %471 = vmatpush.bf16.xpose.msra.mxu0 %v303
    %472 = vmatpush.bf16.xpose.msra.mxu0 %v299
    %473 = vmatpush.bf16.xpose.msra.mxu0 %v295
    %474 = vmatpush.bf16.xpose.msra.mxu0 %v291
    %475 = vmatmul.bf16.gmra.mxu0 %v259
    %v476 = vpop.f32.mrf.mxu0
    %v477 = vadd.f32 %v428, %v476
    %v478 = vpop.f32.mrf.mxu0
    %v479 = vadd.f32 %v430, %v478
    %480 = vmatmul.bf16.gmra.mxu0 %v263
    %v481 = vpop.f32.mrf.mxu0
    %v482 = vadd.f32 %v433, %v481
    %v483 = vpop.f32.mrf.mxu0
    %v484 = vadd.f32 %v435, %v483
    %485 = vmatmul.bf16.gmra.mxu0 %v267
    %v486 = vpop.f32.mrf.mxu0
    %v487 = vadd.f32 %v438, %v486
    %v488 = vpop.f32.mrf.mxu0
    %v489 = vadd.f32 %v440, %v488
    %490 = vmatmul.bf16.gmra.mxu0 %v271
    %v491 = vpop.f32.mrf.mxu0
    %v492 = vadd.f32 %v443, %v491
    %v493 = vpop.f32.mrf.mxu0
    %v494 = vadd.f32 %v445, %v493
    %495 = vmatmul.bf16.gmra.mxu0 %v275
    %v496 = vpop.f32.mrf.mxu0
    %v497 = vadd.f32 %v448, %v496
    %v498 = vpop.f32.mrf.mxu0
    %v499 = vadd.f32 %v450, %v498
    %500 = vmatmul.bf16.gmra.mxu0 %v279
    %v501 = vpop.f32.mrf.mxu0
    %v502 = vadd.f32 %v453, %v501
    %v503 = vpop.f32.mrf.mxu0
    %v504 = vadd.f32 %v455, %v503
    %505 = vmatmul.bf16.gmra.mxu0 %v283
    %v506 = vpop.f32.mrf.mxu0
    %v507 = vadd.f32 %v458, %v506
    %v508 = vpop.f32.mrf.mxu0
    %v509 = vadd.f32 %v460, %v508
    %510 = vmatmul.bf16.gmra.mxu0 %v287
    %v511 = vpop.f32.mrf.mxu0
    %v512 = vadd.f32 %v463, %v511
    %v513 = vpop.f32.mrf.mxu0
    %v514 = vadd.f32 %v465, %v513
    %515 = vdwg.mxu0
    %v516 = vmul.f32 %v477, 22.627417
    %v517 = vmul.f32 %v479, 22.627417
    %v518 = vmul.f32 %v482, 22.627417
    %v519 = vmul.f32 %v484, 22.627417
    %v520 = vmul.f32 %v487, 22.627417
    %v521 = vmul.f32 %v489, 22.627417
    %v522 = vmul.f32 %v492, 22.627417
    %v523 = vmul.f32 %v494, 22.627417
    %v524 = vmul.f32 %v497, 22.627417
    %v525 = vmul.f32 %v499, 22.627417
    %v526 = vmul.f32 %v502, 22.627417
    %v527 = vmul.f32 %v504, 22.627417
    %v528 = vmul.f32 %v507, 22.627417
    %v529 = vmul.f32 %v509, 22.627417
    %v530 = vmul.f32 %v512, 22.627417
    %v531 = vmul.f32 %v514, 22.627417
    %532 = vmax.xlane.f32.xlu0 %v516
    %v533 = vpop.xlane.xlu0 %532
    %534 = vmax.xlane.f32.xlu0 %v517
    %v535 = vpop.xlane.xlu0 %534
    %536 = vmax.xlane.f32.xlu0 %v518
    %v537 = vpop.xlane.xlu0 %536
    %538 = vmax.xlane.f32.xlu0 %v519
    %v539 = vpop.xlane.xlu0 %538
    %540 = vmax.xlane.f32.xlu0 %v520
    %v541 = vpop.xlane.xlu0 %540
    %542 = vmax.xlane.f32.xlu0 %v521
    %v543 = vpop.xlane.xlu0 %542
    %544 = vmax.xlane.f32.xlu0 %v522
    %v545 = vpop.xlane.xlu0 %544
    %546 = vmax.xlane.f32.xlu0 %v523
    %v547 = vpop.xlane.xlu0 %546
    %548 = vmax.xlane.f32.xlu0 %v524
    %v549 = vpop.xlane.xlu0 %548
    %550 = vmax.xlane.f32.xlu0 %v525
    %v551 = vpop.xlane.xlu0 %550
    %552 = vmax.xlane.f32.xlu0 %v526
    %v553 = vpop.xlane.xlu0 %552
    %554 = vmax.xlane.f32.xlu0 %v527
    %v555 = vpop.xlane.xlu0 %554
    %556 = vmax.xlane.f32.xlu0 %v528
    %v557 = vpop.xlane.xlu0 %556
    %558 = vmax.xlane.f32.xlu0 %v529
    %v559 = vpop.xlane.xlu0 %558
    %560 = vmax.xlane.f32.xlu0 %v530
    %v561 = vpop.xlane.xlu0 %560
    %562 = vmax.xlane.f32.xlu0 %v531
    %v563 = vpop.xlane.xlu0 %562
    %v564 = vsub.f32 %v516, %v533
    %v565 = vsub.f32 %v517, %v535
    %v566 = vsub.f32 %v518, %v537
    %v567 = vsub.f32 %v519, %v539
    %v568 = vsub.f32 %v520, %v541
    %v569 = vsub.f32 %v521, %v543
    %v570 = vsub.f32 %v522, %v545
    %v571 = vsub.f32 %v523, %v547
    %v572 = vsub.f32 %v524, %v549
    %v573 = vsub.f32 %v525, %v551
    %v574 = vsub.f32 %v526, %v553
    %v575 = vsub.f32 %v527, %v555
    %v576 = vsub.f32 %v528, %v557
    %v577 = vsub.f32 %v529, %v559
    %v578 = vsub.f32 %v530, %v561
    %v579 = vsub.f32 %v531, %v563
    %v580 = vmul.f32 %v564, 1.442695
    %v581 = vpow.pop %v580
    %v582 = vmul.f32 %v565, 1.442695
    %v583 = vpow.pop %v582
    %v584 = vmul.f32 %v566, 1.442695
    %v585 = vpow.pop %v584
    %v586 = vmul.f32 %v567, 1.442695
    %v587 = vpow.pop %v586
    %v588 = vmul.f32 %v568, 1.442695
    %v589 = vpow.pop %v588
    %v590 = vmul.f32 %v569, 1.442695
    %v591 = vpow.pop %v590
    %v592 = vmul.f32 %v570, 1.442695
    %v593 = vpow.pop %v592
    %v594 = vmul.f32 %v571, 1.442695
    %v595 = vpow.pop %v594
    %v596 = vmul.f32 %v572, 1.442695
    %v597 = vpow.pop %v596
    %v598 = vmul.f32 %v573, 1.442695
    %v599 = vpow.pop %v598
    %v600 = vmul.f32 %v574, 1.442695
    %v601 = vpow.pop %v600
    %v602 = vmul.f32 %v575, 1.442695
    %v603 = vpow.pop %v602
    %v604 = vmul.f32 %v576, 1.442695
    %v605 = vpow.pop %v604
    %v606 = vmul.f32 %v577, 1.442695
    %v607 = vpow.pop %v606
    %v608 = vmul.f32 %v578, 1.442695
    %v609 = vpow.pop %v608
    %v610 = vmul.f32 %v579, 1.442695
    %v611 = vpow.pop %v610
    %612 = vadd.xlane.f32.xlu0 %v581
    %v613 = vpop.xlane.xlu0 %612
    %614 = vadd.xlane.f32.xlu0 %v583
    %v615 = vpop.xlane.xlu0 %614
    %616 = vadd.xlane.f32.xlu0 %v585
    %v617 = vpop.xlane.xlu0 %616
    %618 = vadd.xlane.f32.xlu0 %v587
    %v619 = vpop.xlane.xlu0 %618
    %620 = vadd.xlane.f32.xlu0 %v589
    %v621 = vpop.xlane.xlu0 %620
    %622 = vadd.xlane.f32.xlu0 %v591
    %v623 = vpop.xlane.xlu0 %622
    %624 = vadd.xlane.f32.xlu0 %v593
    %v625 = vpop.xlane.xlu0 %624
    %626 = vadd.xlane.f32.xlu0 %v595
    %v627 = vpop.xlane.xlu0 %626
    %628 = vadd.xlane.f32.xlu0 %v597
    %v629 = vpop.xlane.xlu0 %628
    %630 = vadd.xlane.f32.xlu0 %v599
    %v631 = vpop.xlane.xlu0 %630
    %632 = vadd.xlane.f32.xlu0 %v601
    %v633 = vpop.xlane.xlu0 %632
    %634 = vadd.xlane.f32.xlu0 %v603
    %v635 = vpop.xlane.xlu0 %634
    %636 = vadd.xlane.f32.xlu0 %v605
    %v637 = vpop.xlane.xlu0 %636
    %638 = vadd.xlane.f32.xlu0 %v607
    %v639 = vpop.xlane.xlu0 %638
    %640 = vadd.xlane.f32.xlu0 %v609
    %v641 = vpop.xlane.xlu0 %640
    %642 = vadd.xlane.f32.xlu0 %v611
    %v643 = vpop.xlane.xlu0 %642
    %v644 = vrcp.pop %v613
    %v645 = vmul.f32 %v613, %v644
    %v646 = vsub.f32 1.0, %v645
    %v647 = vmul.f32 %v644, %v646
    %v648 = vadd.f32 %v644, %v647
    %vm649 = vweird.f32 %v613
    %vm650 = vweird.f32 %v644
    %vm651 = vmor %vm649, %vm650
    %v652 = vsel %vm651, %v644, %v648
    %v653 = vand.u32 2147483647, %v613
    %vm654 = vcmp.eq.f32.partialorder %v653, 8.507059e+37
    %v655 = vand.u32 %v613, 2147483648
    %v656 = vor.u32 1.1754944e-38, %v655
    %v657 = vsel %vm654, %v656, %v652
    %v658 = vmul.f32 1.1111112, %v657
    %v659 = vrcp.pop %v615
    %v660 = vmul.f32 %v615, %v659
    %v661 = vsub.f32 1.0, %v660
    %v662 = vmul.f32 %v659, %v661
    %v663 = vadd.f32 %v659, %v662
    %vm664 = vweird.f32 %v615
    %vm665 = vweird.f32 %v659
    %vm666 = vmor %vm664, %vm665
    %v667 = vsel %vm666, %v659, %v663
    %v668 = vand.u32 2147483647, %v615
    %vm669 = vcmp.eq.f32.partialorder %v668, 8.507059e+37
    %v670 = vand.u32 %v615, 2147483648
    %v671 = vor.u32 1.1754944e-38, %v670
    %v672 = vsel %vm669, %v671, %v667
    %v673 = vmul.f32 1.1111112, %v672
    %v674 = vrcp.pop %v617
    %v675 = vmul.f32 %v617, %v674
    %v676 = vsub.f32 1.0, %v675
    %v677 = vmul.f32 %v674, %v676
    %v678 = vadd.f32 %v674, %v677
    %vm679 = vweird.f32 %v617
    %vm680 = vweird.f32 %v674
    %vm681 = vmor %vm679, %vm680
    %v682 = vsel %vm681, %v674, %v678
    %v683 = vand.u32 2147483647, %v617
    %vm684 = vcmp.eq.f32.partialorder %v683, 8.507059e+37
    %v685 = vand.u32 %v617, 2147483648
    %v686 = vor.u32 1.1754944e-38, %v685
    %v687 = vsel %vm684, %v686, %v682
    %v688 = vmul.f32 1.1111112, %v687
    %v689 = vrcp.pop %v619
    %v690 = vmul.f32 %v619, %v689
    %v691 = vsub.f32 1.0, %v690
    %v692 = vmul.f32 %v689, %v691
    %v693 = vadd.f32 %v689, %v692
    %vm694 = vweird.f32 %v619
    %vm695 = vweird.f32 %v689
    %vm696 = vmor %vm694, %vm695
    %v697 = vsel %vm696, %v689, %v693
    %v698 = vand.u32 2147483647, %v619
    %vm699 = vcmp.eq.f32.partialorder %v698, 8.507059e+37
    %v700 = vand.u32 %v619, 2147483648
    %v701 = vor.u32 1.1754944e-38, %v700
    %v702 = vsel %vm699, %v701, %v697
    %v703 = vmul.f32 1.1111112, %v702
    %v704 = vrcp.pop %v621
    %v705 = vmul.f32 %v621, %v704
    %v706 = vsub.f32 1.0, %v705
    %v707 = vmul.f32 %v704, %v706
    %v708 = vadd.f32 %v704, %v707
    %vm709 = vweird.f32 %v621
    %vm710 = vweird.f32 %v704
    %vm711 = vmor %vm709, %vm710
    %v712 = vsel %vm711, %v704, %v708
    %v713 = vand.u32 2147483647, %v621
    %vm714 = vcmp.eq.f32.partialorder %v713, 8.507059e+37
    %v715 = vand.u32 %v621, 2147483648
    %v716 = vor.u32 1.1754944e-38, %v715
    %v717 = vsel %vm714, %v716, %v712
    %v718 = vmul.f32 1.1111112, %v717
    %v719 = vrcp.pop %v623
    %v720 = vmul.f32 %v623, %v719
    %v721 = vsub.f32 1.0, %v720
    %v722 = vmul.f32 %v719, %v721
    %v723 = vadd.f32 %v719, %v722
    %vm724 = vweird.f32 %v623
    %vm725 = vweird.f32 %v719
    %vm726 = vmor %vm724, %vm725
    %v727 = vsel %vm726, %v719, %v723
    %v728 = vand.u32 2147483647, %v623
    %vm729 = vcmp.eq.f32.partialorder %v728, 8.507059e+37
    %v730 = vand.u32 %v623, 2147483648
    %v731 = vor.u32 1.1754944e-38, %v730
    %v732 = vsel %vm729, %v731, %v727
    %v733 = vmul.f32 1.1111112, %v732
    %v734 = vrcp.pop %v625
    %v735 = vmul.f32 %v625, %v734
    %v736 = vsub.f32 1.0, %v735
    %v737 = vmul.f32 %v734, %v736
    %v738 = vadd.f32 %v734, %v737
    %vm739 = vweird.f32 %v625
    %vm740 = vweird.f32 %v734
    %vm741 = vmor %vm739, %vm740
    %v742 = vsel %vm741, %v734, %v738
    %v743 = vand.u32 2147483647, %v625
    %vm744 = vcmp.eq.f32.partialorder %v743, 8.507059e+37
    %v745 = vand.u32 %v625, 2147483648
    %v746 = vor.u32 1.1754944e-38, %v745
    %v747 = vsel %vm744, %v746, %v742
    %v748 = vmul.f32 1.1111112, %v747
    %v749 = vrcp.pop %v627
    %v750 = vmul.f32 %v627, %v749
    %v751 = vsub.f32 1.0, %v750
    %v752 = vmul.f32 %v749, %v751
    %v753 = vadd.f32 %v749, %v752
    %vm754 = vweird.f32 %v627
    %vm755 = vweird.f32 %v749
    %vm756 = vmor %vm754, %vm755
    %v757 = vsel %vm756, %v749, %v753
    %v758 = vand.u32 2147483647, %v627
    %vm759 = vcmp.eq.f32.partialorder %v758, 8.507059e+37
    %v760 = vand.u32 %v627, 2147483648
    %v761 = vor.u32 1.1754944e-38, %v760
    %v762 = vsel %vm759, %v761, %v757
    %v763 = vmul.f32 1.1111112, %v762
    %v764 = vrcp.pop %v629
    %v765 = vmul.f32 %v629, %v764
    %v766 = vsub.f32 1.0, %v765
    %v767 = vmul.f32 %v764, %v766
    %v768 = vadd.f32 %v764, %v767
    %vm769 = vweird.f32 %v629
    %vm770 = vweird.f32 %v764
    %vm771 = vmor %vm769, %vm770
    %v772 = vsel %vm771, %v764, %v768
    %v773 = vand.u32 2147483647, %v629
    %vm774 = vcmp.eq.f32.partialorder %v773, 8.507059e+37
    %v775 = vand.u32 %v629, 2147483648
    %v776 = vor.u32 1.1754944e-38, %v775
    %v777 = vsel %vm774, %v776, %v772
    %v778 = vmul.f32 1.1111112, %v777
    %v779 = vrcp.pop %v631
    %v780 = vmul.f32 %v631, %v779
    %v781 = vsub.f32 1.0, %v780
    %v782 = vmul.f32 %v779, %v781
    %v783 = vadd.f32 %v779, %v782
    %vm784 = vweird.f32 %v631
    %vm785 = vweird.f32 %v779
    %vm786 = vmor %vm784, %vm785
    %v787 = vsel %vm786, %v779, %v783
    %v788 = vand.u32 2147483647, %v631
    %vm789 = vcmp.eq.f32.partialorder %v788, 8.507059e+37
    %v790 = vand.u32 %v631, 2147483648
    %v791 = vor.u32 1.1754944e-38, %v790
    %v792 = vsel %vm789, %v791, %v787
    %v793 = vmul.f32 1.1111112, %v792
    %v794 = vrcp.pop %v633
    %v795 = vmul.f32 %v633, %v794
    %v796 = vsub.f32 1.0, %v795
    %v797 = vmul.f32 %v794, %v796
    %v798 = vadd.f32 %v794, %v797
    %vm799 = vweird.f32 %v633
    %vm800 = vweird.f32 %v794
    %vm801 = vmor %vm799, %vm800
    %v802 = vsel %vm801, %v794, %v798
    %v803 = vand.u32 2147483647, %v633
    %vm804 = vcmp.eq.f32.partialorder %v803, 8.507059e+37
    %v805 = vand.u32 %v633, 2147483648
    %v806 = vor.u32 1.1754944e-38, %v805
    %v807 = vsel %vm804, %v806, %v802
    %v808 = vmul.f32 1.1111112, %v807
    %v809 = vrcp.pop %v635
    %v810 = vmul.f32 %v635, %v809
    %v811 = vsub.f32 1.0, %v810
    %v812 = vmul.f32 %v809, %v811
    %v813 = vadd.f32 %v809, %v812
    %vm814 = vweird.f32 %v635
    %vm815 = vweird.f32 %v809
    %vm816 = vmor %vm814, %vm815
    %v817 = vsel %vm816, %v809, %v813
    %v818 = vand.u32 2147483647, %v635
    %vm819 = vcmp.eq.f32.partialorder %v818, 8.507059e+37
    %v820 = vand.u32 %v635, 2147483648
    %v821 = vor.u32 1.1754944e-38, %v820
    %v822 = vsel %vm819, %v821, %v817
    %v823 = vmul.f32 1.1111112, %v822
    %v824 = vrcp.pop %v637
    %v825 = vmul.f32 %v637, %v824
    %v826 = vsub.f32 1.0, %v825
    %v827 = vmul.f32 %v824, %v826
    %v828 = vadd.f32 %v824, %v827
    %vm829 = vweird.f32 %v637
    %vm830 = vweird.f32 %v824
    %vm831 = vmor %vm829, %vm830
    %v832 = vsel %vm831, %v824, %v828
    %v833 = vand.u32 2147483647, %v637
    %vm834 = vcmp.eq.f32.partialorder %v833, 8.507059e+37
    %v835 = vand.u32 %v637, 2147483648
    %v836 = vor.u32 1.1754944e-38, %v835
    %v837 = vsel %vm834, %v836, %v832
    %v838 = vmul.f32 1.1111112, %v837
    %v839 = vrcp.pop %v639
    %v840 = vmul.f32 %v639, %v839
    %v841 = vsub.f32 1.0, %v840
    %v842 = vmul.f32 %v839, %v841
    %v843 = vadd.f32 %v839, %v842
    %vm844 = vweird.f32 %v639
    %vm845 = vweird.f32 %v839
    %vm846 = vmor %vm844, %vm845
    %v847 = vsel %vm846, %v839, %v843
    %v848 = vand.u32 2147483647, %v639
    %vm849 = vcmp.eq.f32.partialorder %v848, 8.507059e+37
    %v850 = vand.u32 %v639, 2147483648
    %v851 = vor.u32 1.1754944e-38, %v850
    %v852 = vsel %vm849, %v851, %v847
    %v853 = vmul.f32 1.1111112, %v852
    %v854 = vrcp.pop %v641
    %v855 = vmul.f32 %v641, %v854
    %v856 = vsub.f32 1.0, %v855
    %v857 = vmul.f32 %v854, %v856
    %v858 = vadd.f32 %v854, %v857
    %vm859 = vweird.f32 %v641
    %vm860 = vweird.f32 %v854
    %vm861 = vmor %vm859, %vm860
    %v862 = vsel %vm861, %v854, %v858
    %v863 = vand.u32 2147483647, %v641
    %vm864 = vcmp.eq.f32.partialorder %v863, 8.507059e+37
    %v865 = vand.u32 %v641, 2147483648
    %v866 = vor.u32 1.1754944e-38, %v865
    %v867 = vsel %vm864, %v866, %v862
    %v868 = vmul.f32 1.1111112, %v867
    %v869 = vrcp.pop %v643
    %v870 = vmul.f32 %v643, %v869
    %v871 = vsub.f32 1.0, %v870
    %v872 = vmul.f32 %v869, %v871
    %v873 = vadd.f32 %v869, %v872
    %vm874 = vweird.f32 %v643
    %vm875 = vweird.f32 %v869
    %vm876 = vmor %vm874, %vm875
    %v877 = vsel %vm876, %v869, %v873
    %v878 = vand.u32 2147483647, %v643
    %vm879 = vcmp.eq.f32.partialorder %v878, 8.507059e+37
    %v880 = vand.u32 %v643, 2147483648
    %v881 = vor.u32 1.1754944e-38, %v880
    %v882 = vsel %vm879, %v881, %v877
    %v883 = vmul.f32 1.1111112, %v882
    %v884 = vlaneseq
    %v885 = vshrl.u32 %v884, 7
    %v886 = vadd.s32 %v885, 8
    %v887 = vadd.s32 %v885, 16
    %v888 = vadd.s32 %v885, 24
    %v889 = vadd.s32 %v885, 32
    %v890 = vadd.s32 %v885, 40
    %v891 = vadd.s32 %v885, 48
    %v892 = vadd.s32 %v885, 56
    %v893 = vadd.s32 %v885, 64
    %v894 = vadd.s32 %v885, 72
    %v895 = vadd.s32 %v885, 80
    %v896 = vadd.s32 %v885, 88
    %v897 = vadd.s32 %v885, 96
    %v898 = vadd.s32 %v885, 104
    %v899 = vadd.s32 %v885, 112
    %v900 = vadd.s32 %v885, 120
    %v901 = vlaneseq
    %v902 = vand.u32 %v901, 127
    %v903 = vmul.u32 %v885, 128
    %v904 = vmul.u32 %v886, 128
    %v905 = vmul.u32 %v887, 128
    %v906 = vmul.u32 %v888, 128
    %v907 = vmul.u32 %v889, 128
    %v908 = vmul.u32 %v890, 128
    %v909 = vmul.u32 %v891, 128
    %v910 = vmul.u32 %v892, 128
    %v911 = vmul.u32 %v893, 128
    %v912 = vmul.u32 %v894, 128
    %v913 = vmul.u32 %v895, 128
    %v914 = vmul.u32 %v896, 128
    %v915 = vmul.u32 %v897, 128
    %v916 = vmul.u32 %v898, 128
    %v917 = vmul.u32 %v899, 128
    %v918 = vmul.u32 %v900, 128
    %v919 = vadd.s32 %v903, %v902
    %v920 = vadd.s32 %v904, %v902
    %v921 = vadd.s32 %v905, %v902
    %v922 = vadd.s32 %v906, %v902
    %v923 = vadd.s32 %v907, %v902
    %v924 = vadd.s32 %v908, %v902
    %v925 = vadd.s32 %v909, %v902
    %v926 = vadd.s32 %v910, %v902
    %v927 = vadd.s32 %v911, %v902
    %v928 = vadd.s32 %v912, %v902
    %v929 = vadd.s32 %v913, %v902
    %v930 = vadd.s32 %v914, %v902
    %v931 = vadd.s32 %v915, %v902
    %v932 = vadd.s32 %v916, %v902
    %v933 = vadd.s32 %v917, %v902
    %v934 = vadd.s32 %v918, %v902
    %s935 = sld [smem:[#allocation3]]
    %s936 = smul.u32 %s935, 2654435769
    %s937 = sadd.s32 0, 1
    %s938 = smul.u32 %s937, 2246822507
    %s939 = sadd.s32 %s936, %s938
    %v940 = vstv %s939
    %v941 = vadd.s32 %v919, %v940
    %v942 = vadd.s32 %v920, %v940
    %v943 = vadd.s32 %v921, %v940
    %v944 = vadd.s32 %v922, %v940
    %v945 = vadd.s32 %v923, %v940
    %v946 = vadd.s32 %v924, %v940
    %v947 = vadd.s32 %v925, %v940
    %v948 = vadd.s32 %v926, %v940
    %v949 = vadd.s32 %v927, %v940
    %v950 = vadd.s32 %v928, %v940
    %v951 = vadd.s32 %v929, %v940
    %v952 = vadd.s32 %v930, %v940
    %v953 = vadd.s32 %v931, %v940
    %v954 = vadd.s32 %v932, %v940
    %v955 = vadd.s32 %v933, %v940
    %v956 = vadd.s32 %v934, %v940
    %v957 = vshrl.u32 %v941, 16
    %v958 = vshrl.u32 %v942, 16
    %v959 = vshrl.u32 %v943, 16
    %v960 = vshrl.u32 %v944, 16
    %v961 = vshrl.u32 %v945, 16
    %v962 = vshrl.u32 %v946, 16
    %v963 = vshrl.u32 %v947, 16
    %v964 = vshrl.u32 %v948, 16
    %v965 = vshrl.u32 %v949, 16
    %v966 = vshrl.u32 %v950, 16
    %v967 = vshrl.u32 %v951, 16
    %v968 = vshrl.u32 %v952, 16
    %v969 = vshrl.u32 %v953, 16
    %v970 = vshrl.u32 %v954, 16
    %v971 = vshrl.u32 %v955, 16
    %v972 = vshrl.u32 %v956, 16
    %v973 = vxor.u32 %v941, %v957
    %v974 = vxor.u32 %v942, %v958
    %v975 = vxor.u32 %v943, %v959
    %v976 = vxor.u32 %v944, %v960
    %v977 = vxor.u32 %v945, %v961
    %v978 = vxor.u32 %v946, %v962
    %v979 = vxor.u32 %v947, %v963
    %v980 = vxor.u32 %v948, %v964
    %v981 = vxor.u32 %v949, %v965
    %v982 = vxor.u32 %v950, %v966
    %v983 = vxor.u32 %v951, %v967
    %v984 = vxor.u32 %v952, %v968
    %v985 = vxor.u32 %v953, %v969
    %v986 = vxor.u32 %v954, %v970
    %v987 = vxor.u32 %v955, %v971
    %v988 = vxor.u32 %v956, %v972
    %v989 = vmul.u32 %v973, 2146121005
    %v990 = vmul.u32 %v974, 2146121005
    %v991 = vmul.u32 %v975, 2146121005
    %v992 = vmul.u32 %v976, 2146121005
    %v993 = vmul.u32 %v977, 2146121005
    %v994 = vmul.u32 %v978, 2146121005
    %v995 = vmul.u32 %v979, 2146121005
    %v996 = vmul.u32 %v980, 2146121005
    %v997 = vmul.u32 %v981, 2146121005
    %v998 = vmul.u32 %v982, 2146121005
    %v999 = vmul.u32 %v983, 2146121005
    %v1000 = vmul.u32 %v984, 2146121005
    %v1001 = vmul.u32 %v985, 2146121005
    %v1002 = vmul.u32 %v986, 2146121005
    %v1003 = vmul.u32 %v987, 2146121005
    %v1004 = vmul.u32 %v988, 2146121005
    %v1005 = vshrl.u32 %v989, 15
    %v1006 = vshrl.u32 %v990, 15
    %v1007 = vshrl.u32 %v991, 15
    %v1008 = vshrl.u32 %v992, 15
    %v1009 = vshrl.u32 %v993, 15
    %v1010 = vshrl.u32 %v994, 15
    %v1011 = vshrl.u32 %v995, 15
    %v1012 = vshrl.u32 %v996, 15
    %v1013 = vshrl.u32 %v997, 15
    %v1014 = vshrl.u32 %v998, 15
    %v1015 = vshrl.u32 %v999, 15
    %v1016 = vshrl.u32 %v1000, 15
    %v1017 = vshrl.u32 %v1001, 15
    %v1018 = vshrl.u32 %v1002, 15
    %v1019 = vshrl.u32 %v1003, 15
    %v1020 = vshrl.u32 %v1004, 15
    %v1021 = vxor.u32 %v989, %v1005
    %v1022 = vxor.u32 %v990, %v1006
    %v1023 = vxor.u32 %v991, %v1007
    %v1024 = vxor.u32 %v992, %v1008
    %v1025 = vxor.u32 %v993, %v1009
    %v1026 = vxor.u32 %v994, %v1010
    %v1027 = vxor.u32 %v995, %v1011
    %v1028 = vxor.u32 %v996, %v1012
    %v1029 = vxor.u32 %v997, %v1013
    %v1030 = vxor.u32 %v998, %v1014
    %v1031 = vxor.u32 %v999, %v1015
    %v1032 = vxor.u32 %v1000, %v1016
    %v1033 = vxor.u32 %v1001, %v1017
    %v1034 = vxor.u32 %v1002, %v1018
    %v1035 = vxor.u32 %v1003, %v1019
    %v1036 = vxor.u32 %v1004, %v1020
    %v1037 = vmul.u32 %v1021, 2221713035
    %v1038 = vmul.u32 %v1022, 2221713035
    %v1039 = vmul.u32 %v1023, 2221713035
    %v1040 = vmul.u32 %v1024, 2221713035
    %v1041 = vmul.u32 %v1025, 2221713035
    %v1042 = vmul.u32 %v1026, 2221713035
    %v1043 = vmul.u32 %v1027, 2221713035
    %v1044 = vmul.u32 %v1028, 2221713035
    %v1045 = vmul.u32 %v1029, 2221713035
    %v1046 = vmul.u32 %v1030, 2221713035
    %v1047 = vmul.u32 %v1031, 2221713035
    %v1048 = vmul.u32 %v1032, 2221713035
    %v1049 = vmul.u32 %v1033, 2221713035
    %v1050 = vmul.u32 %v1034, 2221713035
    %v1051 = vmul.u32 %v1035, 2221713035
    %v1052 = vmul.u32 %v1036, 2221713035
    %v1053 = vshrl.u32 %v1037, 16
    %v1054 = vshrl.u32 %v1038, 16
    %v1055 = vshrl.u32 %v1039, 16
    %v1056 = vshrl.u32 %v1040, 16
    %v1057 = vshrl.u32 %v1041, 16
    %v1058 = vshrl.u32 %v1042, 16
    %v1059 = vshrl.u32 %v1043, 16
    %v1060 = vshrl.u32 %v1044, 16
    %v1061 = vshrl.u32 %v1045, 16
    %v1062 = vshrl.u32 %v1046, 16
    %v1063 = vshrl.u32 %v1047, 16
    %v1064 = vshrl.u32 %v1048, 16
    %v1065 = vshrl.u32 %v1049, 16
    %v1066 = vshrl.u32 %v1050, 16
    %v1067 = vshrl.u32 %v1051, 16
    %v1068 = vshrl.u32 %v1052, 16
    %v1069 = vxor.u32 %v1037, %v1053
    %v1070 = vxor.u32 %v1038, %v1054
    %v1071 = vxor.u32 %v1039, %v1055
    %v1072 = vxor.u32 %v1040, %v1056
    %v1073 = vxor.u32 %v1041, %v1057
    %v1074 = vxor.u32 %v1042, %v1058
    %v1075 = vxor.u32 %v1043, %v1059
    %v1076 = vxor.u32 %v1044, %v1060
    %v1077 = vxor.u32 %v1045, %v1061
    %v1078 = vxor.u32 %v1046, %v1062
    %v1079 = vxor.u32 %v1047, %v1063
    %v1080 = vxor.u32 %v1048, %v1064
    %v1081 = vxor.u32 %v1049, %v1065
    %v1082 = vxor.u32 %v1050, %v1066
    %v1083 = vxor.u32 %v1051, %v1067
    %v1084 = vxor.u32 %v1052, %v1068
    %v1085 = vadd.s32 %v1069, 2147483648
    %vm1087 = vcmp.ge.s32.totalorder %v1085, 2576980378
    %v1088 = vadd.s32 %v1070, 2147483648
    %vm1090 = vcmp.ge.s32.totalorder %v1088, 2576980378
    %v1091 = vadd.s32 %v1071, 2147483648
    %vm1093 = vcmp.ge.s32.totalorder %v1091, 2576980378
    %v1094 = vadd.s32 %v1072, 2147483648
    %vm1096 = vcmp.ge.s32.totalorder %v1094, 2576980378
    %v1097 = vadd.s32 %v1073, 2147483648
    %vm1099 = vcmp.ge.s32.totalorder %v1097, 2576980378
    %v1100 = vadd.s32 %v1074, 2147483648
    %vm1102 = vcmp.ge.s32.totalorder %v1100, 2576980378
    %v1103 = vadd.s32 %v1075, 2147483648
    %vm1105 = vcmp.ge.s32.totalorder %v1103, 2576980378
    %v1106 = vadd.s32 %v1076, 2147483648
    %vm1108 = vcmp.ge.s32.totalorder %v1106, 2576980378
    %v1109 = vadd.s32 %v1077, 2147483648
    %vm1111 = vcmp.ge.s32.totalorder %v1109, 2576980378
    %v1112 = vadd.s32 %v1078, 2147483648
    %vm1114 = vcmp.ge.s32.totalorder %v1112, 2576980378
    %v1115 = vadd.s32 %v1079, 2147483648
    %vm1117 = vcmp.ge.s32.totalorder %v1115, 2576980378
    %v1118 = vadd.s32 %v1080, 2147483648
    %vm1120 = vcmp.ge.s32.totalorder %v1118, 2576980378
    %v1121 = vadd.s32 %v1081, 2147483648
    %vm1123 = vcmp.ge.s32.totalorder %v1121, 2576980378
    %v1124 = vadd.s32 %v1082, 2147483648
    %vm1126 = vcmp.ge.s32.totalorder %v1124, 2576980378
    %v1127 = vadd.s32 %v1083, 2147483648
    %vm1129 = vcmp.ge.s32.totalorder %v1127, 2576980378
    %v1130 = vadd.s32 %v1084, 2147483648
    %vm1132 = vcmp.ge.s32.totalorder %v1130, 2576980378
    %v1133 = vmul.f32 %v581, %v658
    %v1134 = vmul.f32 %v583, %v673
    %v1135 = vmul.f32 %v585, %v688
    %v1136 = vmul.f32 %v587, %v703
    %v1137 = vmul.f32 %v589, %v718
    %v1138 = vmul.f32 %v591, %v733
    %v1139 = vmul.f32 %v593, %v748
    %v1140 = vmul.f32 %v595, %v763
    %v1141 = vmul.f32 %v597, %v778
    %v1142 = vmul.f32 %v599, %v793
    %v1143 = vmul.f32 %v601, %v808
    %v1144 = vmul.f32 %v603, %v823
    %v1145 = vmul.f32 %v605, %v838
    %v1146 = vmul.f32 %v607, %v853
    %v1147 = vmul.f32 %v609, %v868
    %v1148 = vmul.f32 %v611, %v883
    %v1149 = vsel %vm1087, %v1133, 0.0
    %v1150 = vsel %vm1090, %v1134, 0.0
    %v1151 = vsel %vm1093, %v1135, 0.0
    %v1152 = vsel %vm1096, %v1136, 0.0
    %v1153 = vsel %vm1099, %v1137, 0.0
    %v1154 = vsel %vm1102, %v1138, 0.0
    %v1155 = vsel %vm1105, %v1139, 0.0
    %v1156 = vsel %vm1108, %v1140, 0.0
    %v1157 = vsel %vm1111, %v1141, 0.0
    %v1158 = vsel %vm1114, %v1142, 0.0
    %v1159 = vsel %vm1117, %v1143, 0.0
    %v1160 = vsel %vm1120, %v1144, 0.0
    %v1161 = vsel %vm1123, %v1145, 0.0
    %v1162 = vsel %vm1126, %v1146, 0.0
    %v1163 = vsel %vm1129, %v1147, 0.0
    %v1164 = vsel %vm1132, %v1148, 0.0
    %v1165 = vpack.c.bf16 %v1150, %v1149
    %v1166 = vpack.c.bf16 %v1152, %v1151
    %v1167 = vpack.c.bf16 %v1154, %v1153
    %v1168 = vpack.c.bf16 %v1156, %v1155
    %v1169 = vpack.c.bf16 %v1158, %v1157
    %v1170 = vpack.c.bf16 %v1160, %v1159
    %v1171 = vpack.c.bf16 %v1162, %v1161
    %v1172 = vpack.c.bf16 %v1164, %v1163
    %v1173 = vpack.c.bf16 %v196, %v192
    %v1174 = vpack.c.bf16 %v197, %v193
    %v1175 = vpack.c.bf16 %v198, %v194
    %v1176 = vpack.c.bf16 %v199, %v195
    %v1177 = vpack.c.bf16 %v204, %v200
    %v1178 = vpack.c.bf16 %v205, %v201
    %v1179 = vpack.c.bf16 %v206, %v202
    %v1180 = vpack.c.bf16 %v207, %v203
    %v1181 = vpack.c.bf16 %v212, %v208
    %v1182 = vpack.c.bf16 %v213, %v209
    %v1183 = vpack.c.bf16 %v214, %v210
    %v1184 = vpack.c.bf16 %v215, %v211
    %v1185 = vpack.c.bf16 %v220, %v216
    %v1186 = vpack.c.bf16 %v221, %v217
    %v1187 = vpack.c.bf16 %v222, %v218
    %v1188 = vpack.c.bf16 %v223, %v219
    %v1189 = vpack.c.bf16 %v228, %v224
    %v1190 = vpack.c.bf16 %v229, %v225
    %v1191 = vpack.c.bf16 %v230, %v226
    %v1192 = vpack.c.bf16 %v231, %v227
    %v1193 = vpack.c.bf16 %v236, %v232
    %v1194 = vpack.c.bf16 %v237, %v233
    %v1195 = vpack.c.bf16 %v238, %v234
    %v1196 = vpack.c.bf16 %v239, %v235
    %v1197 = vpack.c.bf16 %v244, %v240
    %v1198 = vpack.c.bf16 %v245, %v241
    %v1199 = vpack.c.bf16 %v246, %v242
    %v1200 = vpack.c.bf16 %v247, %v243
    %v1201 = vpack.c.bf16 %v252, %v248
    %v1202 = vpack.c.bf16 %v253, %v249
    %v1203 = vpack.c.bf16 %v254, %v250
    %v1204 = vpack.c.bf16 %v255, %v251
    %1205 = vmatpush.bf16.msra.mxu0 %v1201
    %1206 = vmatpush.bf16.msra.mxu0 %v1197
    %1207 = vmatpush.bf16.msra.mxu0 %v1193
    %1208 = vmatpush.bf16.msra.mxu0 %v1189
    %1209 = vmatpush.bf16.msra.mxu0 %v1185
    %1210 = vmatpush.bf16.msra.mxu0 %v1181
    %1211 = vmatpush.bf16.msra.mxu0 %v1177
    %1212 = vmatpush.bf16.msra.mxu0 %v1173
    %1213 = vmatmul.bf16.gmra.mxu0 %v1165
    %v1214 = vpop.f32.mrf.mxu0
    %v1215 = vadd.f32 0.0, %v1214
    %v1216 = vpop.f32.mrf.mxu0
    %v1217 = vadd.f32 0.0, %v1216
    %1218 = vmatmul.bf16.gmra.mxu0 %v1166
    %v1219 = vpop.f32.mrf.mxu0
    %v1220 = vadd.f32 0.0, %v1219
    %v1221 = vpop.f32.mrf.mxu0
    %v1222 = vadd.f32 0.0, %v1221
    %1223 = vmatmul.bf16.gmra.mxu0 %v1167
    %v1224 = vpop.f32.mrf.mxu0
    %v1225 = vadd.f32 0.0, %v1224
    %v1226 = vpop.f32.mrf.mxu0
    %v1227 = vadd.f32 0.0, %v1226
    %1228 = vmatmul.bf16.gmra.mxu0 %v1168
    %v1229 = vpop.f32.mrf.mxu0
    %v1230 = vadd.f32 0.0, %v1229
    %v1231 = vpop.f32.mrf.mxu0
    %v1232 = vadd.f32 0.0, %v1231
    %1233 = vmatmul.bf16.gmra.mxu0 %v1169
    %v1234 = vpop.f32.mrf.mxu0
    %v1235 = vadd.f32 0.0, %v1234
    %v1236 = vpop.f32.mrf.mxu0
    %v1237 = vadd.f32 0.0, %v1236
    %1238 = vmatmul.bf16.gmra.mxu0 %v1170
    %v1239 = vpop.f32.mrf.mxu0
    %v1240 = vadd.f32 0.0, %v1239
    %v1241 = vpop.f32.mrf.mxu0
    %v1242 = vadd.f32 0.0, %v1241
    %1243 = vmatmul.bf16.gmra.mxu0 %v1171
    %v1244 = vpop.f32.mrf.mxu0
    %v1245 = vadd.f32 0.0, %v1244
    %v1246 = vpop.f32.mrf.mxu0
    %v1247 = vadd.f32 0.0, %v1246
    %1248 = vmatmul.bf16.gmra.mxu0 %v1172
    %v1249 = vpop.f32.mrf.mxu0
    %v1250 = vadd.f32 0.0, %v1249
    %v1251 = vpop.f32.mrf.mxu0
    %v1252 = vadd.f32 0.0, %v1251
    %1253 = vdwg.mxu0
    %1254 = vmatpush.bf16.msra.mxu0 %v1202
    %1255 = vmatpush.bf16.msra.mxu0 %v1198
    %1256 = vmatpush.bf16.msra.mxu0 %v1194
    %1257 = vmatpush.bf16.msra.mxu0 %v1190
    %1258 = vmatpush.bf16.msra.mxu0 %v1186
    %1259 = vmatpush.bf16.msra.mxu0 %v1182
    %1260 = vmatpush.bf16.msra.mxu0 %v1178
    %1261 = vmatpush.bf16.msra.mxu0 %v1174
    %1262 = vmatmul.bf16.gmra.mxu0 %v1165
    %v1263 = vpop.f32.mrf.mxu0
    %v1264 = vadd.f32 0.0, %v1263
    %v1265 = vpop.f32.mrf.mxu0
    %v1266 = vadd.f32 0.0, %v1265
    %1267 = vmatmul.bf16.gmra.mxu0 %v1166
    %v1268 = vpop.f32.mrf.mxu0
    %v1269 = vadd.f32 0.0, %v1268
    %v1270 = vpop.f32.mrf.mxu0
    %v1271 = vadd.f32 0.0, %v1270
    %1272 = vmatmul.bf16.gmra.mxu0 %v1167
    %v1273 = vpop.f32.mrf.mxu0
    %v1274 = vadd.f32 0.0, %v1273
    %v1275 = vpop.f32.mrf.mxu0
    %v1276 = vadd.f32 0.0, %v1275
    %1277 = vmatmul.bf16.gmra.mxu0 %v1168
    %v1278 = vpop.f32.mrf.mxu0
    %v1279 = vadd.f32 0.0, %v1278
    %v1280 = vpop.f32.mrf.mxu0
    %v1281 = vadd.f32 0.0, %v1280
    %1282 = vmatmul.bf16.gmra.mxu0 %v1169
    %v1283 = vpop.f32.mrf.mxu0
    %v1284 = vadd.f32 0.0, %v1283
    %v1285 = vpop.f32.mrf.mxu0
    %v1286 = vadd.f32 0.0, %v1285
    %1287 = vmatmul.bf16.gmra.mxu0 %v1170
    %v1288 = vpop.f32.mrf.mxu0
    %v1289 = vadd.f32 0.0, %v1288
    %v1290 = vpop.f32.mrf.mxu0
    %v1291 = vadd.f32 0.0, %v1290
    %1292 = vmatmul.bf16.gmra.mxu0 %v1171
    %v1293 = vpop.f32.mrf.mxu0
    %v1294 = vadd.f32 0.0, %v1293
    %v1295 = vpop.f32.mrf.mxu0
    %v1296 = vadd.f32 0.0, %v1295
    %1297 = vmatmul.bf16.gmra.mxu0 %v1172
    %v1298 = vpop.f32.mrf.mxu0
    %v1299 = vadd.f32 0.0, %v1298
    %v1300 = vpop.f32.mrf.mxu0
    %v1301 = vadd.f32 0.0, %v1300
    %1302 = vdwg.mxu0
    %1303 = vmatpush.bf16.msra.mxu0 %v1203
    %1304 = vmatpush.bf16.msra.mxu0 %v1199
    %1305 = vmatpush.bf16.msra.mxu0 %v1195
    %1306 = vmatpush.bf16.msra.mxu0 %v1191
    %1307 = vmatpush.bf16.msra.mxu0 %v1187
    %1308 = vmatpush.bf16.msra.mxu0 %v1183
    %1309 = vmatpush.bf16.msra.mxu0 %v1179
    %1310 = vmatpush.bf16.msra.mxu0 %v1175
    %1311 = vmatmul.bf16.gmra.mxu0 %v1165
    %v1312 = vpop.f32.mrf.mxu0
    %v1313 = vadd.f32 0.0, %v1312
    %v1314 = vpop.f32.mrf.mxu0
    %v1315 = vadd.f32 0.0, %v1314
    %1316 = vmatmul.bf16.gmra.mxu0 %v1166
    %v1317 = vpop.f32.mrf.mxu0
    %v1318 = vadd.f32 0.0, %v1317
    %v1319 = vpop.f32.mrf.mxu0
    %v1320 = vadd.f32 0.0, %v1319
    %1321 = vmatmul.bf16.gmra.mxu0 %v1167
    %v1322 = vpop.f32.mrf.mxu0
    %v1323 = vadd.f32 0.0, %v1322
    %v1324 = vpop.f32.mrf.mxu0
    %v1325 = vadd.f32 0.0, %v1324
    %1326 = vmatmul.bf16.gmra.mxu0 %v1168
    %v1327 = vpop.f32.mrf.mxu0
    %v1328 = vadd.f32 0.0, %v1327
    %v1329 = vpop.f32.mrf.mxu0
    %v1330 = vadd.f32 0.0, %v1329
    %1331 = vmatmul.bf16.gmra.mxu0 %v1169
    %v1332 = vpop.f32.mrf.mxu0
    %v1333 = vadd.f32 0.0, %v1332
    %v1334 = vpop.f32.mrf.mxu0
    %v1335 = vadd.f32 0.0, %v1334
    %1336 = vmatmul.bf16.gmra.mxu0 %v1170
    %v1337 = vpop.f32.mrf.mxu0
    %v1338 = vadd.f32 0.0, %v1337
    %v1339 = vpop.f32.mrf.mxu0
    %v1340 = vadd.f32 0.0, %v1339
    %1341 = vmatmul.bf16.gmra.mxu0 %v1171
    %v1342 = vpop.f32.mrf.mxu0
    %v1343 = vadd.f32 0.0, %v1342
    %v1344 = vpop.f32.mrf.mxu0
    %v1345 = vadd.f32 0.0, %v1344
    %1346 = vmatmul.bf16.gmra.mxu0 %v1172
    %v1347 = vpop.f32.mrf.mxu0
    %v1348 = vadd.f32 0.0, %v1347
    %v1349 = vpop.f32.mrf.mxu0
    %v1350 = vadd.f32 0.0, %v1349
    %1351 = vdwg.mxu0
    %1352 = vmatpush.bf16.msra.mxu0 %v1204
    %1353 = vmatpush.bf16.msra.mxu0 %v1200
    %1354 = vmatpush.bf16.msra.mxu0 %v1196
    %1355 = vmatpush.bf16.msra.mxu0 %v1192
    %1356 = vmatpush.bf16.msra.mxu0 %v1188
    %1357 = vmatpush.bf16.msra.mxu0 %v1184
    %1358 = vmatpush.bf16.msra.mxu0 %v1180
    %1359 = vmatpush.bf16.msra.mxu0 %v1176
    %1360 = vmatmul.bf16.gmra.mxu0 %v1165
    %v1361 = vpop.f32.mrf.mxu0
    %v1362 = vadd.f32 0.0, %v1361
    %v1363 = vpop.f32.mrf.mxu0
    %v1364 = vadd.f32 0.0, %v1363
    %1365 = vmatmul.bf16.gmra.mxu0 %v1166
    %v1366 = vpop.f32.mrf.mxu0
    %v1367 = vadd.f32 0.0, %v1366
    %v1368 = vpop.f32.mrf.mxu0
    %v1369 = vadd.f32 0.0, %v1368
    %1370 = vmatmul.bf16.gmra.mxu0 %v1167
    %v1371 = vpop.f32.mrf.mxu0
    %v1372 = vadd.f32 0.0, %v1371
    %v1373 = vpop.f32.mrf.mxu0
    %v1374 = vadd.f32 0.0, %v1373
    %1375 = vmatmul.bf16.gmra.mxu0 %v1168
    %v1376 = vpop.f32.mrf.mxu0
    %v1377 = vadd.f32 0.0, %v1376
    %v1378 = vpop.f32.mrf.mxu0
    %v1379 = vadd.f32 0.0, %v1378
    %1380 = vmatmul.bf16.gmra.mxu0 %v1169
    %v1381 = vpop.f32.mrf.mxu0
    %v1382 = vadd.f32 0.0, %v1381
    %v1383 = vpop.f32.mrf.mxu0
    %v1384 = vadd.f32 0.0, %v1383
    %1385 = vmatmul.bf16.gmra.mxu0 %v1170
    %v1386 = vpop.f32.mrf.mxu0
    %v1387 = vadd.f32 0.0, %v1386
    %v1388 = vpop.f32.mrf.mxu0
    %v1389 = vadd.f32 0.0, %v1388
    %1390 = vmatmul.bf16.gmra.mxu0 %v1171
    %v1391 = vpop.f32.mrf.mxu0
    %v1392 = vadd.f32 0.0, %v1391
    %v1393 = vpop.f32.mrf.mxu0
    %v1394 = vadd.f32 0.0, %v1393
    %1395 = vmatmul.bf16.gmra.mxu0 %v1172
    %v1396 = vpop.f32.mrf.mxu0
    %v1397 = vadd.f32 0.0, %v1396
    %v1398 = vpop.f32.mrf.mxu0
    %v1399 = vadd.f32 0.0, %v1398
    %1400 = vdwg.mxu0
    %1401 = vst [vmem:[#allocation10] sm:$0xff] %v1215
    %1402 = vst [vmem:[#allocation10 + $0x8] sm:$0xff] %v1264
    %1403 = vst [vmem:[#allocation10 + $0x10] sm:$0xff] %v1313
    %1404 = vst [vmem:[#allocation10 + $0x18] sm:$0xff] %v1362
    %1405 = vst [vmem:[#allocation10 + $0x20] sm:$0xff] %v1217
    %1406 = vst [vmem:[#allocation10 + $0x28] sm:$0xff] %v1266
    %1407 = vst [vmem:[#allocation10 + $0x30] sm:$0xff] %v1315
    %1408 = vst [vmem:[#allocation10 + $0x38] sm:$0xff] %v1364
    %1409 = vst [vmem:[#allocation10 + $0x40] sm:$0xff] %v1220
    %1410 = vst [vmem:[#allocation10 + $0x48] sm:$0xff] %v1269
    %1411 = vst [vmem:[#allocation10 + $0x50] sm:$0xff] %v1318
    %1412 = vst [vmem:[#allocation10 + $0x58] sm:$0xff] %v1367
    %1413 = vst [vmem:[#allocation10 + $0x60] sm:$0xff] %v1222
    %1414 = vst [vmem:[#allocation10 + $0x68] sm:$0xff] %v1271
    %1415 = vst [vmem:[#allocation10 + $0x70] sm:$0xff] %v1320
    %1416 = vst [vmem:[#allocation10 + $0x78] sm:$0xff] %v1369
    %1417 = vst [vmem:[#allocation10 + $0x80] sm:$0xff] %v1225
    %1418 = vst [vmem:[#allocation10 + $0x88] sm:$0xff] %v1274
    %1419 = vst [vmem:[#allocation10 + $0x90] sm:$0xff] %v1323
    %1420 = vst [vmem:[#allocation10 + $0x98] sm:$0xff] %v1372
    %1421 = vst [vmem:[#allocation10 + $0xa0] sm:$0xff] %v1227
    %1422 = vst [vmem:[#allocation10 + $0xa8] sm:$0xff] %v1276
    %1423 = vst [vmem:[#allocation10 + $0xb0] sm:$0xff] %v1325
    %1424 = vst [vmem:[#allocation10 + $0xb8] sm:$0xff] %v1374
    %1425 = vst [vmem:[#allocation10 + $0xc0] sm:$0xff] %v1230
    %1426 = vst [vmem:[#allocation10 + $0xc8] sm:$0xff] %v1279
    %1427 = vst [vmem:[#allocation10 + $0xd0] sm:$0xff] %v1328
    %1428 = vst [vmem:[#allocation10 + $0xd8] sm:$0xff] %v1377
    %1429 = vst [vmem:[#allocation10 + $0xe0] sm:$0xff] %v1232
    %1430 = vst [vmem:[#allocation10 + $0xe8] sm:$0xff] %v1281
    %1431 = vst [vmem:[#allocation10 + $0xf0] sm:$0xff] %v1330
    %1432 = vst [vmem:[#allocation10 + $0xf8] sm:$0xff] %v1379
    %1433 = vst [vmem:[#allocation10 + $0x100] sm:$0xff] %v1235
    %1434 = vst [vmem:[#allocation10 + $0x108] sm:$0xff] %v1284
    %1435 = vst [vmem:[#allocation10 + $0x110] sm:$0xff] %v1333
    %1436 = vst [vmem:[#allocation10 + $0x118] sm:$0xff] %v1382
    %1437 = vst [vmem:[#allocation10 + $0x120] sm:$0xff] %v1237
    %1438 = vst [vmem:[#allocation10 + $0x128] sm:$0xff] %v1286
    %1439 = vst [vmem:[#allocation10 + $0x130] sm:$0xff] %v1335
    %1440 = vst [vmem:[#allocation10 + $0x138] sm:$0xff] %v1384
    %1441 = vst [vmem:[#allocation10 + $0x140] sm:$0xff] %v1240
    %1442 = vst [vmem:[#allocation10 + $0x148] sm:$0xff] %v1289
    %1443 = vst [vmem:[#allocation10 + $0x150] sm:$0xff] %v1338
    %1444 = vst [vmem:[#allocation10 + $0x158] sm:$0xff] %v1387
    %1445 = vst [vmem:[#allocation10 + $0x160] sm:$0xff] %v1242
    %1446 = vst [vmem:[#allocation10 + $0x168] sm:$0xff] %v1291
    %1447 = vst [vmem:[#allocation10 + $0x170] sm:$0xff] %v1340
    %1448 = vst [vmem:[#allocation10 + $0x178] sm:$0xff] %v1389
    %1449 = vst [vmem:[#allocation10 + $0x180] sm:$0xff] %v1245
    %1450 = vst [vmem:[#allocation10 + $0x188] sm:$0xff] %v1294
    %1451 = vst [vmem:[#allocation10 + $0x190] sm:$0xff] %v1343
    %1452 = vst [vmem:[#allocation10 + $0x198] sm:$0xff] %v1392
    %1453 = vst [vmem:[#allocation10 + $0x1a0] sm:$0xff] %v1247
    %1454 = vst [vmem:[#allocation10 + $0x1a8] sm:$0xff] %v1296
    %1455 = vst [vmem:[#allocation10 + $0x1b0] sm:$0xff] %v1345
    %1456 = vst [vmem:[#allocation10 + $0x1b8] sm:$0xff] %v1394
    %1457 = vst [vmem:[#allocation10 + $0x1c0] sm:$0xff] %v1250
    %1458 = vst [vmem:[#allocation10 + $0x1c8] sm:$0xff] %v1299
    %1459 = vst [vmem:[#allocation10 + $0x1d0] sm:$0xff] %v1348
    %1460 = vst [vmem:[#allocation10 + $0x1d8] sm:$0xff] %v1397
    %1461 = vst [vmem:[#allocation10 + $0x1e0] sm:$0xff] %v1252
    %1462 = vst [vmem:[#allocation10 + $0x1e8] sm:$0xff] %v1301
    %1463 = vst [vmem:[#allocation10 + $0x1f0] sm:$0xff] %v1350
    %1464 = vst [vmem:[#allocation10 + $0x1f8] sm:$0xff] %v1399
    // Predicated region
    $region26: #{tpu_custom_call.1} parent=1 // pred_check
      _
    $region27: #{tpu_custom_call.1} parent=1 // pred_check_branch
      %1466 = sbr.rel (0) target = $region29
    $region28: #{tpu_custom_call.1} parent=1 // pred_region
      %1468 = vsyncadd [#allocation6], 0
      %s1469 = sshll.u32 [#allocation10], 4
      %s1470 = int_to_ptr.vmem [resolvable:$true] %s1469
      %s1471 = sshll.u32 %s4, 4
      %s1472 = int_to_ptr.hbm [resolvable:$true] %s1471
      %1477 = dma.vmem_to_hbm [thread:$0]  %s1470, 8192, %s1472, [#allocation6], 512, 512, 32
    $region29: #{tpu_custom_call.1} parent=1 // pred_fallthru
      _
    // Predicated region
    $region30: #{tpu_custom_call.1} parent=1 // pred_check
      _
    $region31: #{tpu_custom_call.1} parent=1 // pred_check_branch
      %1479 = sbr.rel (0) target = $region33
    $region32: #{tpu_custom_call.1} parent=1 // pred_region
      %1481 = dma.done [#allocation6], 8192
    $region33: #{tpu_custom_call.1} parent=1 // pred_fallthru
      _
    %1482 = vsyncpa [#allocation5], 1
    %1483 = vsyncpa [#allocation8], 1
    %1484 = vsyncpa [#allocation6], 1

</llo_original>
